<compile_context>
chip_gen: v7x
topology: tpu7x:2x2x1
jax: 0.10.0
libtpu: 0.0.40
codegen_flags: <defaults>
</compile_context>

<pallas_src>
import jax
import jax.numpy as jnp
from jax.experimental import pallas as pl
from jax.experimental.pallas import tpu as pltpu

BN_EPS = 1e-5
MAX_TILE_ROWS = 1024                       # fits comfortably in 32 MiB scoped VMEM on v5e/v6e/v7x
VMEM_LIMIT_BYTES = 32 * 1024 * 1024


# --------------------------------------------------------------------------- #
# Small helpers                                                                #
# --------------------------------------------------------------------------- #
def _round_up(x, m):
    return (x + m - 1) // m * m


def _tiling(rows_true, max_tr=MAX_TILE_ROWS):
    tr = min(max_tr, _round_up(rows_true, 8))
    rows_pad = _round_up(rows_true, tr)
    return tr, rows_pad, rows_pad // tr


def _pad_rows(a, rows_pad):
    pad = rows_pad - a.shape[0]
    if pad:
        a = jnp.pad(a, ((0, pad), (0, 0)))
    return a


def _compiler_params():
    return pltpu.CompilerParams(
        dimension_semantics=("parallel",),
        vmem_limit_bytes=VMEM_LIMIT_BYTES,
    )


def _row_mask(tr, rows_true):
    # Mask for rows beyond the true row count (row padding of the last tile).
    rid = pl.program_id(0) * tr + jax.lax.broadcasted_iota(jnp.int32, (tr, 1), 0)
    return rid < rows_true


def _write_partial_stats(y, st_ref):
    # Per-tile partial sum / sum-of-squares -> (1, 2, C) block; reduced in glue.
    s = jnp.sum(y, axis=0, keepdims=True)
    q = jnp.sum(y * y, axis=0, keepdims=True)
    st_ref[...] = jnp.concatenate([s, q], axis=0)[None, :, :]


# --------------------------------------------------------------------------- #
# Pallas kernels + wrappers                                                    #
# --------------------------------------------------------------------------- #
def _run_stage1(taps, w, rows_true):
    """Conv2d(3->10, k3, bias=False) at the 4 positions inside each 2x2 pool
    window (4 im2col matmuls sharing the RHS) + MaxPool2d(2).  Emits the raw
    pooled output and per-tile BN partial stats; BN1 + PReLU1 are applied by
    the consumer (stage-2 kernel)."""
    tr, rows_pad, nt = _tiling(rows_true)
    kdim, cout = w.shape
    taps = [_pad_rows(t.astype(jnp.bfloat16), rows_pad) for t in taps]

    def kernel(p00_ref, p01_ref, p10_ref, p11_ref, w_ref, y_ref, st_ref):
        wv = w_ref[...]
        c00 = jnp.dot(p00_ref[...], wv, preferred_element_type=jnp.float32)
        c01 = jnp.dot(p01_ref[...], wv, preferred_element_type=jnp.float32)
        c10 = jnp.dot(p10_ref[...], wv, preferred_element_type=jnp.float32)
        c11 = jnp.dot(p11_ref[...], wv, preferred_element_type=jnp.float32)
        pooled = jnp.maximum(jnp.maximum(c00, c01), jnp.maximum(c10, c11))
        pooled = jnp.where(_row_mask(tr, rows_true), pooled, 0.0)
        y_ref[...] = pooled
        _write_partial_stats(pooled, st_ref)

    row_spec = pl.BlockSpec((tr, kdim), lambda i: (i, 0))
    y_pad, st = pl.pallas_call(
        kernel,
        grid=(nt,),
        out_shape=(jax.ShapeDtypeStruct((rows_pad, cout), jnp.float32),
                   jax.ShapeDtypeStruct((nt, 2, cout), jnp.float32)),
        in_specs=[row_spec] * 4 + [pl.BlockSpec((kdim, cout), lambda i: (0, 0))],
        out_specs=(pl.BlockSpec((tr, cout), lambda i: (i, 0)),
                   pl.BlockSpec((1, 2, cout), lambda i: (i, 0, 0))),
        compiler_params=_compiler_params(),
    )(*taps, w)
    return y_pad, jnp.sum(st, axis=0)          # stats: (2, cout)


def _run_conv_fused(p, scale, shift, alpha, w, rows_true):
    """Applies the previous stage's BN + PReLU (per-column scale/shift tiled
    over the 9 taps, scalar PReLU slope) to the bf16 im2col patches, then
    Conv2d(k3, bias=False) as one MXU matmul.  Emits the raw conv output and
    per-tile BN partial stats for the *next* stage."""
    tr, rows_pad, nt = _tiling(rows_true)
    kdim, cout = w.shape
    p = _pad_rows(p.astype(jnp.bfloat16), rows_pad)

    def kernel(p_ref, sc_ref, sh_ref, al_ref, w_ref, y_ref, st_ref):
        x = p_ref[...].astype(jnp.float32)
        nrm = x * sc_ref[...] + sh_ref[...]
        act = jnp.where(nrm >= 0.0, nrm, al_ref[0, 0] * nrm)
        y = jnp.dot(act.astype(jnp.bfloat16), w_ref[...],
                    preferred_element_type=jnp.float32)
        y = jnp.where(_row_mask(tr, rows_true), y, 0.0)
        y_ref[...] = y
        _write_partial_stats(y, st_ref)

    y_pad, st = pl.pallas_call(
        kernel,
        grid=(nt,),
        out_shape=(jax.ShapeDtypeStruct((rows_pad, cout), jnp.float32),
                   jax.ShapeDtypeStruct((nt, 2, cout), jnp.float32)),
        in_specs=[pl.BlockSpec((tr, kdim), lambda i: (i, 0)),
                  pl.BlockSpec((1, kdim), lambda i: (0, 0)),
                  pl.BlockSpec((1, kdim), lambda i: (0, 0)),
                  pl.BlockSpec((1, 1), lambda i: (0, 0)),
                  pl.BlockSpec((kdim, cout), lambda i: (0, 0))],
        out_specs=(pl.BlockSpec((tr, cout), lambda i: (i, 0)),
                   pl.BlockSpec((1, 2, cout), lambda i: (i, 0, 0))),
        compiler_params=_compiler_params(),
    )(p, scale, shift, alpha, w)
    return y_pad, jnp.sum(st, axis=0)


def _run_final(y_pad, scale, shift, alpha, wh, bh, rows_true):
    """BN3 + PReLU3 on the 32-channel features fused with the three 1x1 heads
    (a single (32, 15) matmul + bias), sigmoid on the confidence column, one
    lane-dense output slab."""
    tr, rows_pad, nt = _tiling(rows_true)
    assert y_pad.shape[0] == rows_pad
    cin = y_pad.shape[1]
    hout = wh.shape[1]

    def kernel(y_ref, sc_ref, sh_ref, al_ref, wh_ref, bh_ref, o_ref):
        y = y_ref[...]
        nrm = y * sc_ref[...] + sh_ref[...]
        act = jnp.where(nrm >= 0.0, nrm, al_ref[0, 0] * nrm)
        z = jnp.dot(act, wh_ref[...], preferred_element_type=jnp.float32) + bh_ref[...]
        col = jax.lax.broadcasted_iota(jnp.int32, z.shape, 1)
        o_ref[...] = jnp.where(col == 0, 1.0 / (1.0 + jnp.exp(-z)), z)

    out = pl.pallas_call(
        kernel,
        grid=(nt,),
        out_shape=jax.ShapeDtypeStruct((rows_pad, hout), jnp.float32),
        in_specs=[pl.BlockSpec((tr, cin), lambda i: (i, 0)),
                  pl.BlockSpec((1, cin), lambda i: (0, 0)),
                  pl.BlockSpec((1, cin), lambda i: (0, 0)),
                  pl.BlockSpec((1, 1), lambda i: (0, 0)),
                  pl.BlockSpec((cin, hout), lambda i: (0, 0)),
                  pl.BlockSpec((1, hout), lambda i: (0, 0))],
        out_specs=pl.BlockSpec((tr, hout), lambda i: (i, 0)),
        compiler_params=_compiler_params(),
    )(y_pad, scale, shift, alpha, wh, bh)
    return out


# --------------------------------------------------------------------------- #
# Glue: im2col, BN folding, full forward                                       #
# --------------------------------------------------------------------------- #
def _im2col_nhwc(x, k):
    """(N,H,W,C) -> (N, H-k+1, W-k+1, k*k*C); tap-major, channel-minor."""
    # TODO(synk): build the 9 taps in-kernel from a halo'd NHWC block instead
    # of materializing the ~9x-inflated patch tensor in HBM.
    n, h, w, c = x.shape
    ho, wo = h - k + 1, w - k + 1
    cols = []
    for dh in range(k):
        for dw in range(k):
            cols.append(x[:, dh:dh + ho, dw:dw + wo, :])
    return jnp.concatenate(cols, axis=-1)


def _bn_affine(st, rows, gamma, beta):
    """Fold training-mode BatchNorm (biased variance) into per-channel scale/shift."""
    mean = (st[0] / rows)[None, :]
    var = (st[1] / rows)[None, :] - mean * mean
    scale = gamma * jax.lax.rsqrt(var + BN_EPS)
    shift = beta - mean * scale
    return scale, shift


def pnet_forward(x_nchw, params):
    n = x_nchw.shape[0]
    x = jnp.transpose(x_nchw, (0, 2, 3, 1)).astype(jnp.float32)   # NHWC

    # --- stage 1: Conv(3->10, k3) + MaxPool2d(2); BN1/PReLU1 deferred --------
    p1 = _im2col_nhwc(x, 3)                        # (N, H-2, W-2, 27)
    hp, wp = p1.shape[1] // 2, p1.shape[2] // 2    # MaxPool2d(2) floors
    rows1 = n * hp * wp
    # TODO(synk): fold the 2x2 pool-tap striding into the kernel's reads
    # instead of materializing four strided copies in HBM.
    taps = [p1[:, dh:dh + 2 * hp:2, dw:dw + 2 * wp:2, :].reshape(rows1, -1)
            for dh in (0, 1) for dw in (0, 1)]
    y1_pad, st1 = _run_stage1(taps, params["w1"], rows1)
    sc1, sh1 = _bn_affine(st1, rows1, params["g1"], params["b1"])
    y1 = y1_pad[:rows1].reshape(n, hp, wp, 10)     # raw pooled conv1 output

    # --- stage 2: fused (BN1 + PReLU1) + Conv(10->16, k3) --------------------
    p2 = _im2col_nhwc(y1, 3)
    h2, w2 = p2.shape[1], p2.shape[2]
    rows2 = n * h2 * w2
    y2_pad, st2 = _run_conv_fused(p2.reshape(rows2, -1),
                                  jnp.tile(sc1, (1, 9)), jnp.tile(sh1, (1, 9)),
                                  params["a1"], params["w2"], rows2)
    sc2, sh2 = _bn_affine(st2, rows2, params["g2"], params["b2"])
    y2 = y2_pad[:rows2].reshape(n, h2, w2, 16)

    # --- stage 3: fused (BN2 + PReLU2) + Conv(16->32, k3) --------------------
    p3 = _im2col_nhwc(y2, 3)
    h3, w3 = p3.shape[1], p3.shape[2]
    rows3 = n * h3 * w3
    y3_pad, st3 = _run_conv_fused(p3.reshape(rows3, -1),
                                  jnp.tile(sc2, (1, 9)), jnp.tile(sh2, (1, 9)),
                                  params["a2"], params["w3"], rows3)
    sc3, sh3 = _bn_affine(st3, rows3, params["g3"], params["b3"])

    # --- fused (BN3 + PReLU3) + 1x1 heads + sigmoid(conf) --------------------
    heads_pad = _run_final(y3_pad, sc3, sh3, params["a3"],
                           params["wh"], params["bh"], rows3)
    heads = heads_pad[:rows3].reshape(n, h3, w3, 15)

    def to_nchw(t):
        return jnp.transpose(t, (0, 3, 1, 2))

    conf = to_nchw(heads[..., 0:1])
    offset = to_nchw(heads[..., 1:5])
    landmark = to_nchw(heads[..., 5:15])
    return conf, offset, landmark


# --------------------------------------------------------------------------- #
# Deterministic parameter init (mirrors the PyTorch module's shapes)           #
# --------------------------------------------------------------------------- #
def init_params(key):
    ks = jax.random.split(key, 15)

    def conv3_w(k, cout, cin):
        # PyTorch layout OIHW -> im2col layout (kh*kw*Cin, Cout), bf16 for MXU.
        w = 0.1 * jax.random.normal(k, (cout, cin, 3, 3), jnp.float32)
        return jnp.transpose(w, (2, 3, 1, 0)).reshape(9 * cin, cout).astype(jnp.bfloat16)

    def conv1x1_w(k, cout, cin):
        w = 0.1 * jax.random.normal(k, (cout, cin, 1, 1), jnp.float32)
        return w.reshape(cout, cin).T              # (Cin, Cout), f32

    def bn_params(kg, kb, c):
        g = 1.0 + 0.1 * jax.random.normal(kg, (1, c), jnp.float32)
        b = 0.1 * jax.random.normal(kb, (1, c), jnp.float32)
        return g, b

    g1, b1 = bn_params(ks[1], ks[2], 10)
    g2, b2 = bn_params(ks[4], ks[5], 16)
    g3, b3 = bn_params(ks[7], ks[8], 32)
    prelu = jnp.full((1, 1), 0.25, jnp.float32)    # PyTorch PReLU default slope

    wc = conv1x1_w(ks[9], 1, 32)
    bc = 0.1 * jax.random.normal(ks[10], (1, 1), jnp.float32)
    wo = conv1x1_w(ks[11], 4, 32)
    bo = 0.1 * jax.random.normal(ks[12], (1, 4), jnp.float32)
    wl = conv1x1_w(ks[13], 10, 32)
    bl = 0.1 * jax.random.normal(ks[14], (1, 10), jnp.float32)

    return dict(
        w1=conv3_w(ks[0], 10, 3), g1=g1, b1=b1, a1=prelu,
        w2=conv3_w(ks[3], 16, 10), g2=g2, b2=b2, a2=prelu,
        w3=conv3_w(ks[6], 32, 16), g3=g3, b3=b3, a3=prelu,
        wh=jnp.concatenate([wc, wo, wl], axis=1),   # (32, 15) fused head weights
        bh=jnp.concatenate([bc, bo, bl], axis=1),   # (1, 15) fused head biases
    )


if __name__ == "__main__":
    x = jax.random.normal(jax.random.PRNGKey(0), (2, 3, 16, 16), jnp.float32)  # NCHW
    params = init_params(jax.random.PRNGKey(1))

    conf, offset, landmark = jax.jit(pnet_forward)(x, params)
    jax.block_until_ready((conf, offset, landmark))

    assert conf.shape == (2, 1, 3, 3)
    assert offset.shape == (2, 4, 3, 3)
    assert landmark.shape == (2, 10, 3, 3)
    print("KERNEL_OK")
</pallas_src>

<mosaic_0001>
module attributes {stable_mosaic.version = 11 : i64} {
  func.func @kernel(%arg0: i32, %arg1: memref<104x27xbf16, #tpu.memory_space<vmem>>, %arg2: memref<104x27xbf16, #tpu.memory_space<vmem>>, %arg3: memref<104x27xbf16, #tpu.memory_space<vmem>>, %arg4: memref<104x27xbf16, #tpu.memory_space<vmem>>, %arg5: memref<27x10xbf16, #tpu.memory_space<vmem>>, %arg6: memref<104x10xf32, #tpu.memory_space<vmem>>, %arg7: memref<1x2x10xf32, #tpu.memory_space<vmem>>) attributes {dimension_semantics = [#tpu.dimension_semantics<parallel>], iteration_bounds = array<i64: 1>, scalar_prefetch = 0 : i64, scratch_operands = 0 : i64, tpu.core_type = #tpu.core_type<tc>, window_params = [{transform_indices = @transform_0, window_bounds = array<i64: 104, 27>}, {transform_indices = @transform_1, window_bounds = array<i64: 104, 27>}, {transform_indices = @transform_2, window_bounds = array<i64: 104, 27>}, {transform_indices = @transform_3, window_bounds = array<i64: 104, 27>}, {pipeline_mode = #tpu.pipeline_mode<synchronous>, transform_indices = @transform_4, window_bounds = array<i64: 27, 10>}, {transform_indices = @transform_5, window_bounds = array<i64: 104, 10>}, {transform_indices = @transform_6, window_bounds = array<i64: 1, 2, 10>}]} {
    %c0 = arith.constant 0 : index
    %c0_0 = arith.constant 0 : index
    %0 = vector.load %arg5[%c0, %c0_0] : memref<27x10xbf16, #tpu.memory_space<vmem>>, vector<27x10xbf16>
    %c0_1 = arith.constant 0 : index
    %c0_2 = arith.constant 0 : index
    %1 = vector.load %arg1[%c0_1, %c0_2] : memref<104x27xbf16, #tpu.memory_space<vmem>>, vector<104x27xbf16>
    %cst = arith.constant dense<0.000000e+00> : vector<104x10xf32>
    %2 = tpu.matmul %1, %0, %cst {dimension_numbers = #tpu.dot_dimension_numbers<[1], [0], [0], [1], [0, 0, 1, 1], [], []>} : vector<104x27xbf16>, vector<27x10xbf16>, vector<104x10xf32> -> vector<104x10xf32>
    %c0_3 = arith.constant 0 : index
    %c0_4 = arith.constant 0 : index
    %3 = vector.load %arg2[%c0_3, %c0_4] : memref<104x27xbf16, #tpu.memory_space<vmem>>, vector<104x27xbf16>
    %cst_5 = arith.constant dense<0.000000e+00> : vector<104x10xf32>
    %4 = tpu.matmul %3, %0, %cst_5 {dimension_numbers = #tpu.dot_dimension_numbers<[1], [0], [0], [1], [0, 0, 1, 1], [], []>} : vector<104x27xbf16>, vector<27x10xbf16>, vector<104x10xf32> -> vector<104x10xf32>
    %c0_6 = arith.constant 0 : index
    %c0_7 = arith.constant 0 : index
    %5 = vector.load %arg3[%c0_6, %c0_7] : memref<104x27xbf16, #tpu.memory_space<vmem>>, vector<104x27xbf16>
    %cst_8 = arith.constant dense<0.000000e+00> : vector<104x10xf32>
    %6 = tpu.matmul %5, %0, %cst_8 {dimension_numbers = #tpu.dot_dimension_numbers<[1], [0], [0], [1], [0, 0, 1, 1], [], []>} : vector<104x27xbf16>, vector<27x10xbf16>, vector<104x10xf32> -> vector<104x10xf32>
    %c0_9 = arith.constant 0 : index
    %c0_10 = arith.constant 0 : index
    %7 = vector.load %arg4[%c0_9, %c0_10] : memref<104x27xbf16, #tpu.memory_space<vmem>>, vector<104x27xbf16>
    %cst_11 = arith.constant dense<0.000000e+00> : vector<104x10xf32>
    %8 = tpu.matmul %7, %0, %cst_11 {dimension_numbers = #tpu.dot_dimension_numbers<[1], [0], [0], [1], [0, 0, 1, 1], [], []>} : vector<104x27xbf16>, vector<27x10xbf16>, vector<104x10xf32> -> vector<104x10xf32>
    %9 = arith.maximumf %2, %4 : vector<104x10xf32>
    %10 = arith.maximumf %6, %8 : vector<104x10xf32>
    %11 = arith.maximumf %9, %10 : vector<104x10xf32>
    %c104_i32 = arith.constant 104 : i32
    %12 = arith.muli %arg0, %c104_i32 : i32
    %13 = tpu.iota {dimensions = array<i32: 0>} : vector<104x1xi32>
    %14 = vector.broadcast %12 : i32 to vector<104x1xi32>
    %15 = arith.addi %14, %13 : vector<104x1xi32>
    %c98_i32 = arith.constant 98 : i32
    %16 = vector.broadcast %c98_i32 : i32 to vector<104x1xi32>
    %17 = arith.cmpi slt, %15, %16 : vector<104x1xi32>
    %cst_12 = arith.constant 0.000000e+00 : f32
    %18 = vector.shape_cast %17 : vector<104x1xi1> to vector<104x1xi1>
    %19 = vector.broadcast %18 : vector<104x1xi1> to vector<104x10xi1>
    %20 = vector.broadcast %cst_12 : f32 to vector<104x10xf32>
    %21 = arith.select %19, %11, %20 : vector<104x10xi1>, vector<104x10xf32>
    %c0_13 = arith.constant 0 : index
    %c0_14 = arith.constant 0 : index
    %22 = vector.load %arg6[%c0_13, %c0_14] : memref<104x10xf32, #tpu.memory_space<vmem>>, vector<104x10xf32>
    tpu.vector_store %arg6[%c0_13, %c0_14], %21 {strides = array<i32>} : memref<104x10xf32, #tpu.memory_space<vmem>>, vector<104x10xf32>,
    %cst_15 = arith.constant dense<0.000000e+00> : vector<10xf32>
    %23 = vector.multi_reduction <add>, %21, %cst_15 [0] : vector<104x10xf32> to vector<10xf32>
    %24 = vector.shape_cast %23 : vector<10xf32> to vector<1x10xf32>
    %25 = arith.mulf %21, %21 : vector<104x10xf32>
    %cst_16 = arith.constant dense<0.000000e+00> : vector<10xf32>
    %26 = vector.multi_reduction <add>, %25, %cst_16 [0] : vector<104x10xf32> to vector<10xf32>
    %27 = vector.shape_cast %26 : vector<10xf32> to vector<1x10xf32>
    %28 = tpu.concatenate %24, %27 in 0 : vector<1x10xf32>, vector<1x10xf32> -> vector<2x10xf32>
    %29 = vector.shape_cast %28 : vector<2x10xf32> to vector<1x2x10xf32>
    %c0_17 = arith.constant 0 : index
    %c0_18 = arith.constant 0 : index
    %c0_19 = arith.constant 0 : index
    %30 = vector.load %arg7[%c0_17, %c0_18, %c0_19] : memref<1x2x10xf32, #tpu.memory_space<vmem>>, vector<1x2x10xf32>
    tpu.vector_store %arg7[%c0_17, %c0_18, %c0_19], %29 {strides = array<i32>} : memref<1x2x10xf32, #tpu.memory_space<vmem>>, vector<1x2x10xf32>,
    return
  }
  func.func @transform_0(%arg0: i32) -> (i32, i32) {
    %c0_i32 = arith.constant 0 : i32
    %c0_i32_0 = arith.constant 0 : i32
    return %arg0, %c0_i32 : i32, i32
  }
  func.func @transform_1(%arg0: i32) -> (i32, i32) {
    %c0_i32 = arith.constant 0 : i32
    %c0_i32_0 = arith.constant 0 : i32
    return %arg0, %c0_i32 : i32, i32
  }
  func.func @transform_2(%arg0: i32) -> (i32, i32) {
    %c0_i32 = arith.constant 0 : i32
    %c0_i32_0 = arith.constant 0 : i32
    return %arg0, %c0_i32 : i32, i32
  }
  func.func @transform_3(%arg0: i32) -> (i32, i32) {
    %c0_i32 = arith.constant 0 : i32
    %c0_i32_0 = arith.constant 0 : i32
    return %arg0, %c0_i32 : i32, i32
  }
  func.func @transform_4(%arg0: i32) -> (i32, i32) {
    %c0_i32 = arith.constant 0 : i32
    %c0_i32_0 = arith.constant 0 : i32
    %c0_i32_1 = arith.constant 0 : i32
    return %c0_i32, %c0_i32_0 : i32, i32
  }
  func.func @transform_5(%arg0: i32) -> (i32, i32) {
    %c0_i32 = arith.constant 0 : i32
    %c0_i32_0 = arith.constant 0 : i32
    return %arg0, %c0_i32 : i32, i32
  }
  func.func @transform_6(%arg0: i32) -> (i32, i32, i32) {
    %c0_i32 = arith.constant 0 : i32
    %c0_i32_0 = arith.constant 0 : i32
    %c0_i32_1 = arith.constant 0 : i32
    return %arg0, %c0_i32, %c0_i32_0 : i32, i32, i32
  }
}

module attributes {stable_mosaic.version = 11 : i64} {
  func.func @kernel(%arg0: i32, %arg1: memref<56x90xbf16, #tpu.memory_space<vmem>>, %arg2: memref<1x90xf32, #tpu.memory_space<vmem>>, %arg3: memref<1x90xf32, #tpu.memory_space<vmem>>, %arg4: memref<1x1xf32, #tpu.memory_space<vmem>>, %arg5: memref<90x16xbf16, #tpu.memory_space<vmem>>, %arg6: memref<56x16xf32, #tpu.memory_space<vmem>>, %arg7: memref<1x2x16xf32, #tpu.memory_space<vmem>>) attributes {dimension_semantics = [#tpu.dimension_semantics<parallel>], iteration_bounds = array<i64: 1>, scalar_prefetch = 0 : i64, scratch_operands = 0 : i64, tpu.core_type = #tpu.core_type<tc>, window_params = [{transform_indices = @transform_0, window_bounds = array<i64: 56, 90>}, {pipeline_mode = #tpu.pipeline_mode<synchronous>, transform_indices = @transform_1, window_bounds = array<i64: 1, 90>}, {pipeline_mode = #tpu.pipeline_mode<synchronous>, transform_indices = @transform_2, window_bounds = array<i64: 1, 90>}, {pipeline_mode = #tpu.pipeline_mode<synchronous>, transform_indices = @transform_3, window_bounds = array<i64: 1, 1>}, {pipeline_mode = #tpu.pipeline_mode<synchronous>, transform_indices = @transform_4, window_bounds = array<i64: 90, 16>}, {transform_indices = @transform_5, window_bounds = array<i64: 56, 16>}, {transform_indices = @transform_6, window_bounds = array<i64: 1, 2, 16>}]} {
    %c0 = arith.constant 0 : index
    %c0_0 = arith.constant 0 : index
    %0 = vector.load %arg1[%c0, %c0_0] : memref<56x90xbf16, #tpu.memory_space<vmem>>, vector<56x90xbf16>
    %1 = arith.extf %0 : vector<56x90xbf16> to vector<56x90xf32>
    %c0_1 = arith.constant 0 : index
    %c0_2 = arith.constant 0 : index
    %2 = vector.load %arg2[%c0_1, %c0_2] : memref<1x90xf32, #tpu.memory_space<vmem>>, vector<1x90xf32>
    %3 = vector.broadcast %2 : vector<1x90xf32> to vector<56x90xf32>
    %4 = arith.mulf %1, %3 : vector<56x90xf32>
    %c0_3 = arith.constant 0 : index
    %c0_4 = arith.constant 0 : index
    %5 = vector.load %arg3[%c0_3, %c0_4] : memref<1x90xf32, #tpu.memory_space<vmem>>, vector<1x90xf32>
    %6 = vector.broadcast %5 : vector<1x90xf32> to vector<56x90xf32>
    %7 = arith.addf %4, %6 : vector<56x90xf32>
    %cst = arith.constant 0.000000e+00 : f32
    %8 = vector.broadcast %cst : f32 to vector<56x90xf32>
    %9 = arith.cmpf oge, %7, %8 : vector<56x90xf32>
    %c0_5 = arith.constant 0 : index
    %c0_6 = arith.constant 0 : index
    %10 = vector.load %arg4[%c0_5, %c0_6] : memref<1x1xf32, #tpu.memory_space<vmem>>, vector<1x1xf32>
    %11 = vector.extract %10[0, 0] : f32 from vector<1x1xf32>
    %12 = vector.broadcast %11 : f32 to vector<56x90xf32>
    %13 = arith.mulf %12, %7 : vector<56x90xf32>
    %14 = arith.select %9, %7, %13 : vector<56x90xi1>, vector<56x90xf32>
    %15 = arith.truncf %14 : vector<56x90xf32> to vector<56x90xbf16>
    %c0_7 = arith.constant 0 : index
    %c0_8 = arith.constant 0 : index
    %16 = vector.load %arg5[%c0_7, %c0_8] : memref<90x16xbf16, #tpu.memory_space<vmem>>, vector<90x16xbf16>
    %cst_9 = arith.constant dense<0.000000e+00> : vector<56x16xf32>
    %17 = tpu.matmul %15, %16, %cst_9 {dimension_numbers = #tpu.dot_dimension_numbers<[1], [0], [0], [1], [0, 0, 1, 1], [], []>} : vector<56x90xbf16>, vector<90x16xbf16>, vector<56x16xf32> -> vector<56x16xf32>
    %c56_i32 = arith.constant 56 : i32
    %18 = arith.muli %arg0, %c56_i32 : i32
    %19 = tpu.iota {dimensions = array<i32: 0>} : vector<56x1xi32>
    %20 = vector.broadcast %18 : i32 to vector<56x1xi32>
    %21 = arith.addi %20, %19 : vector<56x1xi32>
    %c50_i32 = arith.constant 50 : i32
    %22 = vector.broadcast %c50_i32 : i32 to vector<56x1xi32>
    %23 = arith.cmpi slt, %21, %22 : vector<56x1xi32>
    %cst_10 = arith.constant 0.000000e+00 : f32
    %24 = vector.shape_cast %23 : vector<56x1xi1> to vector<56x1xi1>
    %25 = vector.broadcast %24 : vector<56x1xi1> to vector<56x16xi1>
    %26 = vector.broadcast %cst_10 : f32 to vector<56x16xf32>
    %27 = arith.select %25, %17, %26 : vector<56x16xi1>, vector<56x16xf32>
    %c0_11 = arith.constant 0 : index
    %c0_12 = arith.constant 0 : index
    %28 = vector.load %arg6[%c0_11, %c0_12] : memref<56x16xf32, #tpu.memory_space<vmem>>, vector<56x16xf32>
    tpu.vector_store %arg6[%c0_11, %c0_12], %27 {strides = array<i32>} : memref<56x16xf32, #tpu.memory_space<vmem>>, vector<56x16xf32>,
    %cst_13 = arith.constant dense<0.000000e+00> : vector<16xf32>
    %29 = vector.multi_reduction <add>, %27, %cst_13 [0] : vector<56x16xf32> to vector<16xf32>
    %30 = vector.shape_cast %29 : vector<16xf32> to vector<1x16xf32>
    %31 = arith.mulf %27, %27 : vector<56x16xf32>
    %cst_14 = arith.constant dense<0.000000e+00> : vector<16xf32>
    %32 = vector.multi_reduction <add>, %31, %cst_14 [0] : vector<56x16xf32> to vector<16xf32>
    %33 = vector.shape_cast %32 : vector<16xf32> to vector<1x16xf32>
    %34 = tpu.concatenate %30, %33 in 0 : vector<1x16xf32>, vector<1x16xf32> -> vector<2x16xf32>
    %35 = vector.shape_cast %34 : vector<2x16xf32> to vector<1x2x16xf32>
    %c0_15 = arith.constant 0 : index
    %c0_16 = arith.constant 0 : index
    %c0_17 = arith.constant 0 : index
    %36 = vector.load %arg7[%c0_15, %c0_16, %c0_17] : memref<1x2x16xf32, #tpu.memory_space<vmem>>, vector<1x2x16xf32>
    tpu.vector_store %arg7[%c0_15, %c0_16, %c0_17], %35 {strides = array<i32>} : memref<1x2x16xf32, #tpu.memory_space<vmem>>, vector<1x2x16xf32>,
    return
  }
  func.func @transform_0(%arg0: i32) -> (i32, i32) {
    %c0_i32 = arith.constant 0 : i32
    %c0_i32_0 = arith.constant 0 : i32
    return %arg0, %c0_i32 : i32, i32
  }
  func.func @transform_1(%arg0: i32) -> (i32, i32) {
    %c0_i32 = arith.constant 0 : i32
    %c0_i32_0 = arith.constant 0 : i32
    %c0_i32_1 = arith.constant 0 : i32
    return %c0_i32, %c0_i32_0 : i32, i32
  }
  func.func @transform_2(%arg0: i32) -> (i32, i32) {
    %c0_i32 = arith.constant 0 : i32
    %c0_i32_0 = arith.constant 0 : i32
    %c0_i32_1 = arith.constant 0 : i32
    return %c0_i32, %c0_i32_0 : i32, i32
  }
  func.func @transform_3(%arg0: i32) -> (i32, i32) {
    %c0_i32 = arith.constant 0 : i32
    %c0_i32_0 = arith.constant 0 : i32
    %c0_i32_1 = arith.constant 0 : i32
    return %c0_i32, %c0_i32_0 : i32, i32
  }
  func.func @transform_4(%arg0: i32) -> (i32, i32) {
    %c0_i32 = arith.constant 0 : i32
    %c0_i32_0 = arith.constant 0 : i32
    %c0_i32_1 = arith.constant 0 : i32
    return %c0_i32, %c0_i32_0 : i32, i32
  }
  func.func @transform_5(%arg0: i32) -> (i32, i32) {
    %c0_i32 = arith.constant 0 : i32
    %c0_i32_0 = arith.constant 0 : i32
    return %arg0, %c0_i32 : i32, i32
  }
  func.func @transform_6(%arg0: i32) -> (i32, i32, i32) {
    %c0_i32 = arith.constant 0 : i32
    %c0_i32_0 = arith.constant 0 : i32
    %c0_i32_1 = arith.constant 0 : i32
    return %arg0, %c0_i32, %c0_i32_0 : i32, i32, i32
  }
}

module attributes {stable_mosaic.version = 11 : i64} {
  func.func @kernel(%arg0: i32, %arg1: memref<24x144xbf16, #tpu.memory_space<vmem>>, %arg2: memref<1x144xf32, #tpu.memory_space<vmem>>, %arg3: memref<1x144xf32, #tpu.memory_space<vmem>>, %arg4: memref<1x1xf32, #tpu.memory_space<vmem>>, %arg5: memref<144x32xbf16, #tpu.memory_space<vmem>>, %arg6: memref<24x32xf32, #tpu.memory_space<vmem>>, %arg7: memref<1x2x32xf32, #tpu.memory_space<vmem>>) attributes {dimension_semantics = [#tpu.dimension_semantics<parallel>], iteration_bounds = array<i64: 1>, scalar_prefetch = 0 : i64, scratch_operands = 0 : i64, tpu.core_type = #tpu.core_type<tc>, window_params = [{transform_indices = @transform_0, window_bounds = array<i64: 24, 144>}, {pipeline_mode = #tpu.pipeline_mode<synchronous>, transform_indices = @transform_1, window_bounds = array<i64: 1, 144>}, {pipeline_mode = #tpu.pipeline_mode<synchronous>, transform_indices = @transform_2, window_bounds = array<i64: 1, 144>}, {pipeline_mode = #tpu.pipeline_mode<synchronous>, transform_indices = @transform_3, window_bounds = array<i64: 1, 1>}, {pipeline_mode = #tpu.pipeline_mode<synchronous>, transform_indices = @transform_4, window_bounds = array<i64: 144, 32>}, {transform_indices = @transform_5, window_bounds = array<i64: 24, 32>}, {transform_indices = @transform_6, window_bounds = array<i64: 1, 2, 32>}]} {
    %c0 = arith.constant 0 : index
    %c0_0 = arith.constant 0 : index
    %0 = vector.load %arg1[%c0, %c0_0] : memref<24x144xbf16, #tpu.memory_space<vmem>>, vector<24x144xbf16>
    %1 = arith.extf %0 : vector<24x144xbf16> to vector<24x144xf32>
    %c0_1 = arith.constant 0 : index
    %c0_2 = arith.constant 0 : index
    %2 = vector.load %arg2[%c0_1, %c0_2] : memref<1x144xf32, #tpu.memory_space<vmem>>, vector<1x144xf32>
    %3 = vector.broadcast %2 : vector<1x144xf32> to vector<24x144xf32>
    %4 = arith.mulf %1, %3 : vector<24x144xf32>
    %c0_3 = arith.constant 0 : index
    %c0_4 = arith.constant 0 : index
    %5 = vector.load %arg3[%c0_3, %c0_4] : memref<1x144xf32, #tpu.memory_space<vmem>>, vector<1x144xf32>
    %6 = vector.broadcast %5 : vector<1x144xf32> to vector<24x144xf32>
    %7 = arith.addf %4, %6 : vector<24x144xf32>
    %cst = arith.constant 0.000000e+00 : f32
    %8 = vector.broadcast %cst : f32 to vector<24x144xf32>
    %9 = arith.cmpf oge, %7, %8 : vector<24x144xf32>
    %c0_5 = arith.constant 0 : index
    %c0_6 = arith.constant 0 : index
    %10 = vector.load %arg4[%c0_5, %c0_6] : memref<1x1xf32, #tpu.memory_space<vmem>>, vector<1x1xf32>
    %11 = vector.extract %10[0, 0] : f32 from vector<1x1xf32>
    %12 = vector.broadcast %11 : f32 to vector<24x144xf32>
    %13 = arith.mulf %12, %7 : vector<24x144xf32>
    %14 = arith.select %9, %7, %13 : vector<24x144xi1>, vector<24x144xf32>
    %15 = arith.truncf %14 : vector<24x144xf32> to vector<24x144xbf16>
    %c0_7 = arith.constant 0 : index
    %c0_8 = arith.constant 0 : index
    %16 = vector.load %arg5[%c0_7, %c0_8] : memref<144x32xbf16, #tpu.memory_space<vmem>>, vector<144x32xbf16>
    %cst_9 = arith.constant dense<0.000000e+00> : vector<24x32xf32>
    %17 = tpu.matmul %15, %16, %cst_9 {dimension_numbers = #tpu.dot_dimension_numbers<[1], [0], [0], [1], [0, 0, 1, 1], [], []>} : vector<24x144xbf16>, vector<144x32xbf16>, vector<24x32xf32> -> vector<24x32xf32>
    %c24_i32 = arith.constant 24 : i32
    %18 = arith.muli %arg0, %c24_i32 : i32
    %19 = tpu.iota {dimensions = array<i32: 0>} : vector<24x1xi32>
    %20 = vector.broadcast %18 : i32 to vector<24x1xi32>
    %21 = arith.addi %20, %19 : vector<24x1xi32>
    %c18_i32 = arith.constant 18 : i32
    %22 = vector.broadcast %c18_i32 : i32 to vector<24x1xi32>
    %23 = arith.cmpi slt, %21, %22 : vector<24x1xi32>
    %cst_10 = arith.constant 0.000000e+00 : f32
    %24 = vector.shape_cast %23 : vector<24x1xi1> to vector<24x1xi1>
    %25 = vector.broadcast %24 : vector<24x1xi1> to vector<24x32xi1>
    %26 = vector.broadcast %cst_10 : f32 to vector<24x32xf32>
    %27 = arith.select %25, %17, %26 : vector<24x32xi1>, vector<24x32xf32>
    %c0_11 = arith.constant 0 : index
    %c0_12 = arith.constant 0 : index
    %28 = vector.load %arg6[%c0_11, %c0_12] : memref<24x32xf32, #tpu.memory_space<vmem>>, vector<24x32xf32>
    tpu.vector_store %arg6[%c0_11, %c0_12], %27 {strides = array<i32>} : memref<24x32xf32, #tpu.memory_space<vmem>>, vector<24x32xf32>,
    %cst_13 = arith.constant dense<0.000000e+00> : vector<32xf32>
    %29 = vector.multi_reduction <add>, %27, %cst_13 [0] : vector<24x32xf32> to vector<32xf32>
    %30 = vector.shape_cast %29 : vector<32xf32> to vector<1x32xf32>
    %31 = arith.mulf %27, %27 : vector<24x32xf32>
    %cst_14 = arith.constant dense<0.000000e+00> : vector<32xf32>
    %32 = vector.multi_reduction <add>, %31, %cst_14 [0] : vector<24x32xf32> to vector<32xf32>
    %33 = vector.shape_cast %32 : vector<32xf32> to vector<1x32xf32>
    %34 = tpu.concatenate %30, %33 in 0 : vector<1x32xf32>, vector<1x32xf32> -> vector<2x32xf32>
    %35 = vector.shape_cast %34 : vector<2x32xf32> to vector<1x2x32xf32>
    %c0_15 = arith.constant 0 : index
    %c0_16 = arith.constant 0 : index
    %c0_17 = arith.constant 0 : index
    %36 = vector.load %arg7[%c0_15, %c0_16, %c0_17] : memref<1x2x32xf32, #tpu.memory_space<vmem>>, vector<1x2x32xf32>
    tpu.vector_store %arg7[%c0_15, %c0_16, %c0_17], %35 {strides = array<i32>} : memref<1x2x32xf32, #tpu.memory_space<vmem>>, vector<1x2x32xf32>,
    return
  }
  func.func @transform_0(%arg0: i32) -> (i32, i32) {
    %c0_i32 = arith.constant 0 : i32
    %c0_i32_0 = arith.constant 0 : i32
    return %arg0, %c0_i32 : i32, i32
  }
  func.func @transform_1(%arg0: i32) -> (i32, i32) {
    %c0_i32 = arith.constant 0 : i32
    %c0_i32_0 = arith.constant 0 : i32
    %c0_i32_1 = arith.constant 0 : i32
    return %c0_i32, %c0_i32_0 : i32, i32
  }
  func.func @transform_2(%arg0: i32) -> (i32, i32) {
    %c0_i32 = arith.constant 0 : i32
    %c0_i32_0 = arith.constant 0 : i32
    %c0_i32_1 = arith.constant 0 : i32
    return %c0_i32, %c0_i32_0 : i32, i32
  }
  func.func @transform_3(%arg0: i32) -> (i32, i32) {
    %c0_i32 = arith.constant 0 : i32
    %c0_i32_0 = arith.constant 0 : i32
    %c0_i32_1 = arith.constant 0 : i32
    return %c0_i32, %c0_i32_0 : i32, i32
  }
  func.func @transform_4(%arg0: i32) -> (i32, i32) {
    %c0_i32 = arith.constant 0 : i32
    %c0_i32_0 = arith.constant 0 : i32
    %c0_i32_1 = arith.constant 0 : i32
    return %c0_i32, %c0_i32_0 : i32, i32
  }
  func.func @transform_5(%arg0: i32) -> (i32, i32) {
    %c0_i32 = arith.constant 0 : i32
    %c0_i32_0 = arith.constant 0 : i32
    return %arg0, %c0_i32 : i32, i32
  }
  func.func @transform_6(%arg0: i32) -> (i32, i32, i32) {
    %c0_i32 = arith.constant 0 : i32
    %c0_i32_0 = arith.constant 0 : i32
    %c0_i32_1 = arith.constant 0 : i32
    return %arg0, %c0_i32, %c0_i32_0 : i32, i32, i32
  }
}

module attributes {stable_mosaic.version = 11 : i64} {
  func.func @kernel(%arg0: i32, %arg1: memref<24x32xf32, #tpu.memory_space<vmem>>, %arg2: memref<1x32xf32, #tpu.memory_space<vmem>>, %arg3: memref<1x32xf32, #tpu.memory_space<vmem>>, %arg4: memref<1x1xf32, #tpu.memory_space<vmem>>, %arg5: memref<32x15xf32, #tpu.memory_space<vmem>>, %arg6: memref<1x15xf32, #tpu.memory_space<vmem>>, %arg7: memref<24x15xf32, #tpu.memory_space<vmem>>) attributes {dimension_semantics = [#tpu.dimension_semantics<parallel>], iteration_bounds = array<i64: 1>, scalar_prefetch = 0 : i64, scratch_operands = 0 : i64, tpu.core_type = #tpu.core_type<tc>, window_params = [{transform_indices = @transform_0, window_bounds = array<i64: 24, 32>}, {pipeline_mode = #tpu.pipeline_mode<synchronous>, transform_indices = @transform_1, window_bounds = array<i64: 1, 32>}, {pipeline_mode = #tpu.pipeline_mode<synchronous>, transform_indices = @transform_2, window_bounds = array<i64: 1, 32>}, {pipeline_mode = #tpu.pipeline_mode<synchronous>, transform_indices = @transform_3, window_bounds = array<i64: 1, 1>}, {pipeline_mode = #tpu.pipeline_mode<synchronous>, transform_indices = @transform_4, window_bounds = array<i64: 32, 15>}, {pipeline_mode = #tpu.pipeline_mode<synchronous>, transform_indices = @transform_5, window_bounds = array<i64: 1, 15>}, {transform_indices = @transform_6, window_bounds = array<i64: 24, 15>}]} {
    %c0 = arith.constant 0 : index
    %c0_0 = arith.constant 0 : index
    %0 = vector.load %arg1[%c0, %c0_0] : memref<24x32xf32, #tpu.memory_space<vmem>>, vector<24x32xf32>
    %c0_1 = arith.constant 0 : index
    %c0_2 = arith.constant 0 : index
    %1 = vector.load %arg2[%c0_1, %c0_2] : memref<1x32xf32, #tpu.memory_space<vmem>>, vector<1x32xf32>
    %2 = vector.broadcast %1 : vector<1x32xf32> to vector<24x32xf32>
    %3 = arith.mulf %0, %2 : vector<24x32xf32>
    %c0_3 = arith.constant 0 : index
    %c0_4 = arith.constant 0 : index
    %4 = vector.load %arg3[%c0_3, %c0_4] : memref<1x32xf32, #tpu.memory_space<vmem>>, vector<1x32xf32>
    %5 = vector.broadcast %4 : vector<1x32xf32> to vector<24x32xf32>
    %6 = arith.addf %3, %5 : vector<24x32xf32>
    %cst = arith.constant 0.000000e+00 : f32
    %7 = vector.broadcast %cst : f32 to vector<24x32xf32>
    %8 = arith.cmpf oge, %6, %7 : vector<24x32xf32>
    %c0_5 = arith.constant 0 : index
    %c0_6 = arith.constant 0 : index
    %9 = vector.load %arg4[%c0_5, %c0_6] : memref<1x1xf32, #tpu.memory_space<vmem>>, vector<1x1xf32>
    %10 = vector.extract %9[0, 0] : f32 from vector<1x1xf32>
    %11 = vector.broadcast %10 : f32 to vector<24x32xf32>
    %12 = arith.mulf %11, %6 : vector<24x32xf32>
    %13 = arith.select %8, %6, %12 : vector<24x32xi1>, vector<24x32xf32>
    %c0_7 = arith.constant 0 : index
    %c0_8 = arith.constant 0 : index
    %14 = vector.load %arg5[%c0_7, %c0_8] : memref<32x15xf32, #tpu.memory_space<vmem>>, vector<32x15xf32>
    %cst_9 = arith.constant dense<0.000000e+00> : vector<24x15xf32>
    %15 = tpu.matmul %13, %14, %cst_9 {dimension_numbers = #tpu.dot_dimension_numbers<[1], [0], [0], [1], [0, 0, 1, 1], [], []>} : vector<24x32xf32>, vector<32x15xf32>, vector<24x15xf32> -> vector<24x15xf32>
    %c0_10 = arith.constant 0 : index
    %c0_11 = arith.constant 0 : index
    %16 = vector.load %arg6[%c0_10, %c0_11] : memref<1x15xf32, #tpu.memory_space<vmem>>, vector<1x15xf32>
    %17 = vector.broadcast %16 : vector<1x15xf32> to vector<24x15xf32>
    %18 = arith.addf %15, %17 : vector<24x15xf32>
    %19 = tpu.iota {dimensions = array<i32: 1>} : vector<24x15xi32>
    %c0_i32 = arith.constant 0 : i32
    %20 = vector.broadcast %c0_i32 : i32 to vector<24x15xi32>
    %21 = arith.cmpi eq, %19, %20 : vector<24x15xi32>
    %cst_12 = arith.constant 0.000000e+00 : f32
    %22 = vector.broadcast %cst_12 : f32 to vector<24x15xf32>
    %23 = arith.subf %22, %18 : vector<24x15xf32>
    %24 = math.exp %23 : vector<24x15xf32>
    %cst_13 = arith.constant 1.000000e+00 : f32
    %25 = vector.broadcast %cst_13 : f32 to vector<24x15xf32>
    %26 = arith.addf %25, %24 : vector<24x15xf32>
    %cst_14 = arith.constant 1.000000e+00 : f32
    %27 = vector.broadcast %cst_14 : f32 to vector<24x15xf32>
    %28 = arith.divf %27, %26 : vector<24x15xf32>
    %29 = arith.select %21, %28, %18 : vector<24x15xi1>, vector<24x15xf32>
    %c0_15 = arith.constant 0 : index
    %c0_16 = arith.constant 0 : index
    %30 = vector.load %arg7[%c0_15, %c0_16] : memref<24x15xf32, #tpu.memory_space<vmem>>, vector<24x15xf32>
    tpu.vector_store %arg7[%c0_15, %c0_16], %29 {strides = array<i32>} : memref<24x15xf32, #tpu.memory_space<vmem>>, vector<24x15xf32>,
    return
  }
  func.func @transform_0(%arg0: i32) -> (i32, i32) {
    %c0_i32 = arith.constant 0 : i32
    %c0_i32_0 = arith.constant 0 : i32
    return %arg0, %c0_i32 : i32, i32
  }
  func.func @transform_1(%arg0: i32) -> (i32, i32) {
    %c0_i32 = arith.constant 0 : i32
    %c0_i32_0 = arith.constant 0 : i32
    %c0_i32_1 = arith.constant 0 : i32
    return %c0_i32, %c0_i32_0 : i32, i32
  }
  func.func @transform_2(%arg0: i32) -> (i32, i32) {
    %c0_i32 = arith.constant 0 : i32
    %c0_i32_0 = arith.constant 0 : i32
    %c0_i32_1 = arith.constant 0 : i32
    return %c0_i32, %c0_i32_0 : i32, i32
  }
  func.func @transform_3(%arg0: i32) -> (i32, i32) {
    %c0_i32 = arith.constant 0 : i32
    %c0_i32_0 = arith.constant 0 : i32
    %c0_i32_1 = arith.constant 0 : i32
    return %c0_i32, %c0_i32_0 : i32, i32
  }
  func.func @transform_4(%arg0: i32) -> (i32, i32) {
    %c0_i32 = arith.constant 0 : i32
    %c0_i32_0 = arith.constant 0 : i32
    %c0_i32_1 = arith.constant 0 : i32
    return %c0_i32, %c0_i32_0 : i32, i32
  }
  func.func @transform_5(%arg0: i32) -> (i32, i32) {
    %c0_i32 = arith.constant 0 : i32
    %c0_i32_0 = arith.constant 0 : i32
    %c0_i32_1 = arith.constant 0 : i32
    return %c0_i32, %c0_i32_0 : i32, i32
  }
  func.func @transform_6(%arg0: i32) -> (i32, i32) {
    %c0_i32 = arith.constant 0 : i32
    %c0_i32_0 = arith.constant 0 : i32
    return %arg0, %c0_i32 : i32, i32
  }
}

</mosaic_0001>

<llo_original>
// kernel: pnet_forward.4
$region0: #{pnet_forward.4}
  #allocation0 [shape = 'u32[]', space=smem, size = 0x4, offset = 0x4, fixed_abs, tag = 'smem constant byte address 0x4 - core index']
  #allocation1 [shape = 'u32[144,128]{1,0:T(1,128)}', space=vmem, size = 0x12000, scoped, tag = 'internal scratch']
  %s0 = inlined_call_operand.vmem [shape: bf16[104,27], index: 0, kind: input, shape index: {}]
  %s1 = inlined_call_operand.vmem [shape: bf16[104,27], index: 1, kind: input, shape index: {}]
  %s2 = inlined_call_operand.vmem [shape: bf16[104,27], index: 2, kind: input, shape index: {}]
  %s3 = inlined_call_operand.vmem [shape: bf16[104,27], index: 3, kind: input, shape index: {}]
  %s4 = inlined_call_operand.vmem [shape: bf16[27,10], index: 4, kind: input, shape index: {}]
  %s5 = inlined_call_operand.vmem [shape: f32[104,10], index: 5, kind: output, shape index: {0}]
  %s6 = inlined_call_operand.vmem [shape: f32[1,2,10], index: 6, kind: output, shape index: {1}]
  %7 = xla_tuple %s5, %s6
  %s8 = sld [smem:[#allocation0]]
  $region38: #{pnet_forward.4} parent=0
    _
  %s10 = ssub.s32 1, %s8
  %s11 = scalar_select 0, %s10, %s8
  // Predicated region
  $region2: #{pnet_forward.4} parent=0 // pred_check
    _
  $region3: #{pnet_forward.4} parent=0 // pred_check_branch
    %13 = sbr.rel (0) target = $region5
  $region4: #{pnet_forward.4} parent=0 // pred_region
    _
  $region5: #{pnet_forward.4} parent=0 // pred_fallthru
    _
  // Predicated region
  $region6: #{pnet_forward.4} parent=0 // pred_check
    _
  $region7: #{pnet_forward.4} parent=0 // pred_check_branch
    %15 = sbr.rel (0) target = $region9
  $region8: #{pnet_forward.4} parent=0 // pred_region
    _
  $region9: #{pnet_forward.4} parent=0 // pred_fallthru
    _
  // Predicated region
  $region10: #{pnet_forward.4} parent=0 // pred_check
    _
  $region11: #{pnet_forward.4} parent=0 // pred_check_branch
    %17 = sbr.rel (0) target = $region13
  $region12: #{pnet_forward.4} parent=0 // pred_region
    _
  $region13: #{pnet_forward.4} parent=0 // pred_fallthru
    _
  // Predicated region
  $region14: #{pnet_forward.4} parent=0 // pred_check
    _
  $region15: #{pnet_forward.4} parent=0 // pred_check_branch
    %19 = sbr.rel (0) target = $region17
  $region16: #{pnet_forward.4} parent=0 // pred_region
    _
  $region17: #{pnet_forward.4} parent=0 // pred_fallthru
    _
  // Predicated region
  $region18: #{pnet_forward.4} parent=0 // pred_check
    _
  $region19: #{pnet_forward.4} parent=0 // pred_check_branch
    %21 = sbr.rel (0) target = $region21
  $region20: #{pnet_forward.4} parent=0 // pred_region
    _
  $region21: #{pnet_forward.4} parent=0 // pred_fallthru
    _
  %v23 = vld [vmem:[%s4] sm:$0xf]
  %v24 = vld [vmem:[%s4 + $0x4] sm:$0xf]
  %v25 = vld [vmem:[%s4 + $0x8] sm:$0xf]
  %v26 = vld [vmem:[%s4 + $0xc] sm:$0x3]
  %v27 = vld [vmem:[%s0] sm:$0xf]
  %v28 = vld [vmem:[%s0 + $0x4] sm:$0xf]
  %v29 = vld [vmem:[%s0 + $0x8] sm:$0xf]
  %v30 = vld [vmem:[%s0 + $0xc] sm:$0xf]
  %v31 = vld [vmem:[%s0 + $0x10] sm:$0xf]
  %v32 = vld [vmem:[%s0 + $0x14] sm:$0xf]
  %v33 = vld [vmem:[%s0 + $0x18] sm:$0xf]
  %v34 = vld [vmem:[%s0 + $0x1c] sm:$0xf]
  %v35 = vld [vmem:[%s0 + $0x20] sm:$0xf]
  %v36 = vld [vmem:[%s0 + $0x24] sm:$0xf]
  %v37 = vld [vmem:[%s0 + $0x28] sm:$0xf]
  %v38 = vld [vmem:[%s0 + $0x2c] sm:$0xf]
  %v39 = vld [vmem:[%s0 + $0x30] sm:$0xf]
  %v53 = vunpack.c.l.b16 %v27
  %v54 = vunpack.c.l.b16 %v28
  %v55 = vunpack.c.l.b16 %v29
  %v56 = vunpack.c.l.b16 %v30
  %v57 = vunpack.c.l.b16 %v31
  %v58 = vunpack.c.l.b16 %v32
  %v59 = vunpack.c.l.b16 %v33
  %v60 = vunpack.c.l.b16 %v34
  %v61 = vunpack.c.l.b16 %v35
  %v62 = vunpack.c.l.b16 %v36
  %v63 = vunpack.c.l.b16 %v37
  %v64 = vunpack.c.l.b16 %v38
  %v65 = vunpack.c.l.b16 %v39
  %v66 = vpack.c.b16 %v54, %v53
  %v67 = vpack.c.b16 %v56, %v55
  %v68 = vpack.c.b16 %v58, %v57
  %v69 = vpack.c.b16 %v60, %v59
  %v70 = vpack.c.b16 %v62, %v61
  %v71 = vpack.c.b16 %v64, %v63
  %v72 = vpack.c.b16 %v65, %v65
  %v77 = vunpack.c.l.b16 %v23
  %v78 = vunpack.c.l.b16 %v24
  %v79 = vunpack.c.l.b16 %v25
  %v80 = vunpack.c.l.b16 %v26
  %v81 = vpack.c.b16 %v78, %v77
  %v82 = vpack.c.b16 %v80, %v79
  %vm84 = vcmask 220160
  %v86 = vsel %vm84, %v66, 0
  %v89 = vsel %vm84, %v67, 0
  %v92 = vsel %vm84, %v68, 0
  %v95 = vsel %vm84, %v69, 0
  %v98 = vsel %vm84, %v70, 0
  %v101 = vsel %vm84, %v71, 0
  %v104 = vsel %vm84, %v72, 0
  %vm106 = vcmask 1044480
  %vm107 = vcmask 1045504
  %v108 = vsel %vm106, 4294967295, 65535
  %v109 = vsel %vm107, %v108, 0
  %v111 = vand.u32 %v82, %v109
  %113 = vmatprep.subr.bf16.mxu0 0
  %114 = vmatpush1.bf16.msra.mxu0 %v81
  %115 = vmatprep.subr.bf16.mxu0 0
  %116 = vmatpush1.bf16.msra.mxu0 %v111
  %117 = vmatprep.subr.bf16.mxu0 0
  %118 = vmatpush1.bf16.msra.mxu0 0
  %119 = vmatprep.subr.bf16.mxu0 0
  %120 = vmatpush1.bf16.msra.mxu0 0
  %121 = vmatprep.subr.bf16.mxu0 0
  %122 = vmatpush1.bf16.msra.mxu0 0
  %123 = vmatprep.subr.bf16.mxu0 0
  %124 = vmatpush1.bf16.msra.mxu0 0
  %125 = vmatprep.subr.bf16.mxu0 0
  %126 = vmatpush1.bf16.msra.mxu0 0
  %127 = vmatprep.subr.bf16.mxu0 0
  %128 = vmatpush1.bf16.msra.mxu0 0
  %129 = vmatprep.subr.bf16.mxu0 0
  %130 = vmatpush1.bf16.msra.mxu0 0
  %131 = vmatprep.subr.bf16.mxu0 0
  %132 = vmatpush1.bf16.msra.mxu0 0
  %133 = vmatprep.subr.bf16.mxu0 0
  %134 = vmatpush1.bf16.msra.mxu0 0
  %135 = vmatprep.subr.bf16.mxu0 0
  %136 = vmatpush1.bf16.msra.mxu0 0
  %137 = vmatprep.subr.bf16.mxu0 0
  %138 = vmatpush1.bf16.msra.mxu0 0
  %139 = vmatprep.subr.bf16.mxu0 0
  %140 = vmatpush1.bf16.msra.mxu0 0
  %141 = vmatprep.subr.bf16.mxu0 0
  %142 = vmatpush1.bf16.msra.mxu0 0
  %143 = vmatprep.subr.bf16.mxu0 0
  %144 = vmatpush1.bf16.msra.mxu0 0
  %145 = vmatprep.mubr.bf16.mxu0 0
  %146 = vmatmul.mubr.bf16.gmra.mrb[0].mxu0 %v86
  %v147 = vpop.f32.mrb[0].mxu0
  %v148 = vadd.f32 0.0, %v147
  %v149 = vpop.f32.mrb[0].mxu0
  %v150 = vpop.f32.mrb[0].mxu0
  %v151 = vadd.f32 0.0, %v150
  %v152 = vpop.f32.mrb[0].mxu0
  %153 = vmatprep.mubr.bf16.mxu0 0
  %154 = vmatmul.mubr.bf16.gmra.mrb[0].mxu0 %v89
  %v155 = vpop.f32.mrb[0].mxu0
  %v156 = vadd.f32 0.0, %v155
  %v157 = vpop.f32.mrb[0].mxu0
  %v158 = vpop.f32.mrb[0].mxu0
  %v159 = vadd.f32 0.0, %v158
  %v160 = vpop.f32.mrb[0].mxu0
  %161 = vmatprep.mubr.bf16.mxu0 0
  %162 = vmatmul.mubr.bf16.gmra.mrb[0].mxu0 %v92
  %v163 = vpop.f32.mrb[0].mxu0
  %v164 = vadd.f32 0.0, %v163
  %v165 = vpop.f32.mrb[0].mxu0
  %v166 = vpop.f32.mrb[0].mxu0
  %v167 = vadd.f32 0.0, %v166
  %v168 = vpop.f32.mrb[0].mxu0
  %169 = vmatprep.mubr.bf16.mxu0 0
  %170 = vmatmul.mubr.bf16.gmra.mrb[0].mxu0 %v95
  %v171 = vpop.f32.mrb[0].mxu0
  %v172 = vadd.f32 0.0, %v171
  %v173 = vpop.f32.mrb[0].mxu0
  %v174 = vpop.f32.mrb[0].mxu0
  %v175 = vadd.f32 0.0, %v174
  %v176 = vpop.f32.mrb[0].mxu0
  %177 = vmatprep.mubr.bf16.mxu0 0
  %178 = vmatmul.mubr.bf16.gmra.mrb[0].mxu0 %v98
  %v179 = vpop.f32.mrb[0].mxu0
  %v180 = vadd.f32 0.0, %v179
  %v181 = vpop.f32.mrb[0].mxu0
  %v182 = vpop.f32.mrb[0].mxu0
  %v183 = vadd.f32 0.0, %v182
  %v184 = vpop.f32.mrb[0].mxu0
  %185 = vmatprep.mubr.bf16.mxu0 0
  %186 = vmatmul.mubr.bf16.gmra.mrb[0].mxu0 %v101
  %v187 = vpop.f32.mrb[0].mxu0
  %v188 = vadd.f32 0.0, %v187
  %v189 = vpop.f32.mrb[0].mxu0
  %v190 = vpop.f32.mrb[0].mxu0
  %v191 = vadd.f32 0.0, %v190
  %v192 = vpop.f32.mrb[0].mxu0
  %193 = vmatprep.mubr.bf16.mxu0 0
  %194 = vmatmul.mubr.bf16.gmra.mrb[0].mxu0 %v104
  %v195 = vpop.f32.mrb[0].mxu0
  %v196 = vadd.f32 0.0, %v195
  %v197 = vpop.f32.mrb[0].mxu0
  %v198 = vpop.f32.mrb[0].mxu0
  %v199 = vpop.f32.mrb[0].mxu0
  %200 = vdwg.mxu0
  %v201 = vld [vmem:[%s1] sm:$0xf]
  %v202 = vld [vmem:[%s1 + $0x4] sm:$0xf]
  %v203 = vld [vmem:[%s1 + $0x8] sm:$0xf]
  %v204 = vld [vmem:[%s1 + $0xc] sm:$0xf]
  %v205 = vld [vmem:[%s1 + $0x10] sm:$0xf]
  %v206 = vld [vmem:[%s1 + $0x14] sm:$0xf]
  %v207 = vld [vmem:[%s1 + $0x18] sm:$0xf]
  %v208 = vld [vmem:[%s1 + $0x1c] sm:$0xf]
  %v209 = vld [vmem:[%s1 + $0x20] sm:$0xf]
  %v210 = vld [vmem:[%s1 + $0x24] sm:$0xf]
  %v211 = vld [vmem:[%s1 + $0x28] sm:$0xf]
  %v212 = vld [vmem:[%s1 + $0x2c] sm:$0xf]
  %v213 = vld [vmem:[%s1 + $0x30] sm:$0xf]
  %v227 = vunpack.c.l.b16 %v201
  %v228 = vunpack.c.l.b16 %v202
  %v229 = vunpack.c.l.b16 %v203
  %v230 = vunpack.c.l.b16 %v204
  %v231 = vunpack.c.l.b16 %v205
  %v232 = vunpack.c.l.b16 %v206
  %v233 = vunpack.c.l.b16 %v207
  %v234 = vunpack.c.l.b16 %v208
  %v235 = vunpack.c.l.b16 %v209
  %v236 = vunpack.c.l.b16 %v210
  %v237 = vunpack.c.l.b16 %v211
  %v238 = vunpack.c.l.b16 %v212
  %v239 = vunpack.c.l.b16 %v213
  %v240 = vpack.c.b16 %v228, %v227
  %v241 = vpack.c.b16 %v230, %v229
  %v242 = vpack.c.b16 %v232, %v231
  %v243 = vpack.c.b16 %v234, %v233
  %v244 = vpack.c.b16 %v236, %v235
  %v245 = vpack.c.b16 %v238, %v237
  %v246 = vpack.c.b16 %v239, %v239
  %v248 = vsel %vm84, %v240, 0
  %v251 = vsel %vm84, %v241, 0
  %v254 = vsel %vm84, %v242, 0
  %v257 = vsel %vm84, %v243, 0
  %v260 = vsel %vm84, %v244, 0
  %v263 = vsel %vm84, %v245, 0
  %v266 = vsel %vm84, %v246, 0
  %268 = vmatprep.subr.bf16.mxu0 0
  %269 = vmatpush1.bf16.msra.mxu0 %v81
  %270 = vmatprep.subr.bf16.mxu0 0
  %271 = vmatpush1.bf16.msra.mxu0 %v111
  %272 = vmatprep.subr.bf16.mxu0 0
  %273 = vmatpush1.bf16.msra.mxu0 0
  %274 = vmatprep.subr.bf16.mxu0 0
  %275 = vmatpush1.bf16.msra.mxu0 0
  %276 = vmatprep.subr.bf16.mxu0 0
  %277 = vmatpush1.bf16.msra.mxu0 0
  %278 = vmatprep.subr.bf16.mxu0 0
  %279 = vmatpush1.bf16.msra.mxu0 0
  %280 = vmatprep.subr.bf16.mxu0 0
  %281 = vmatpush1.bf16.msra.mxu0 0
  %282 = vmatprep.subr.bf16.mxu0 0
  %283 = vmatpush1.bf16.msra.mxu0 0
  %284 = vmatprep.subr.bf16.mxu0 0
  %285 = vmatpush1.bf16.msra.mxu0 0
  %286 = vmatprep.subr.bf16.mxu0 0
  %287 = vmatpush1.bf16.msra.mxu0 0
  %288 = vmatprep.subr.bf16.mxu0 0
  %289 = vmatpush1.bf16.msra.mxu0 0
  %290 = vmatprep.subr.bf16.mxu0 0
  %291 = vmatpush1.bf16.msra.mxu0 0
  %292 = vmatprep.subr.bf16.mxu0 0
  %293 = vmatpush1.bf16.msra.mxu0 0
  %294 = vmatprep.subr.bf16.mxu0 0
  %295 = vmatpush1.bf16.msra.mxu0 0
  %296 = vmatprep.subr.bf16.mxu0 0
  %297 = vmatpush1.bf16.msra.mxu0 0
  %298 = vmatprep.subr.bf16.mxu0 0
  %299 = vmatpush1.bf16.msra.mxu0 0
  %300 = vmatprep.mubr.bf16.mxu0 0
  %301 = vmatmul.mubr.bf16.gmra.mrb[0].mxu0 %v248
  %v302 = vpop.f32.mrb[0].mxu0
  %v303 = vadd.f32 0.0, %v302
  %v304 = vpop.f32.mrb[0].mxu0
  %v305 = vpop.f32.mrb[0].mxu0
  %v306 = vadd.f32 0.0, %v305
  %v307 = vpop.f32.mrb[0].mxu0
  %308 = vmatprep.mubr.bf16.mxu0 0
  %309 = vmatmul.mubr.bf16.gmra.mrb[0].mxu0 %v251
  %v310 = vpop.f32.mrb[0].mxu0
  %v311 = vadd.f32 0.0, %v310
  %v312 = vpop.f32.mrb[0].mxu0
  %v313 = vpop.f32.mrb[0].mxu0
  %v314 = vadd.f32 0.0, %v313
  %v315 = vpop.f32.mrb[0].mxu0
  %316 = vmatprep.mubr.bf16.mxu0 0
  %317 = vmatmul.mubr.bf16.gmra.mrb[0].mxu0 %v254
  %v318 = vpop.f32.mrb[0].mxu0
  %v319 = vadd.f32 0.0, %v318
  %v320 = vpop.f32.mrb[0].mxu0
  %v321 = vpop.f32.mrb[0].mxu0
  %v322 = vadd.f32 0.0, %v321
  %v323 = vpop.f32.mrb[0].mxu0
  %324 = vmatprep.mubr.bf16.mxu0 0
  %325 = vmatmul.mubr.bf16.gmra.mrb[0].mxu0 %v257
  %v326 = vpop.f32.mrb[0].mxu0
  %v327 = vadd.f32 0.0, %v326
  %v328 = vpop.f32.mrb[0].mxu0
  %v329 = vpop.f32.mrb[0].mxu0
  %v330 = vadd.f32 0.0, %v329
  %v331 = vpop.f32.mrb[0].mxu0
  %332 = vmatprep.mubr.bf16.mxu0 0
  %333 = vmatmul.mubr.bf16.gmra.mrb[0].mxu0 %v260
  %v334 = vpop.f32.mrb[0].mxu0
  %v335 = vadd.f32 0.0, %v334
  %v336 = vpop.f32.mrb[0].mxu0
  %v337 = vpop.f32.mrb[0].mxu0
  %v338 = vadd.f32 0.0, %v337
  %v339 = vpop.f32.mrb[0].mxu0
  %340 = vmatprep.mubr.bf16.mxu0 0
  %341 = vmatmul.mubr.bf16.gmra.mrb[0].mxu0 %v263
  %v342 = vpop.f32.mrb[0].mxu0
  %v343 = vadd.f32 0.0, %v342
  %v344 = vpop.f32.mrb[0].mxu0
  %v345 = vpop.f32.mrb[0].mxu0
  %v346 = vadd.f32 0.0, %v345
  %v347 = vpop.f32.mrb[0].mxu0
  %348 = vmatprep.mubr.bf16.mxu0 0
  %349 = vmatmul.mubr.bf16.gmra.mrb[0].mxu0 %v266
  %v350 = vpop.f32.mrb[0].mxu0
  %v351 = vadd.f32 0.0, %v350
  %v352 = vpop.f32.mrb[0].mxu0
  %v353 = vpop.f32.mrb[0].mxu0
  %v354 = vpop.f32.mrb[0].mxu0
  %355 = vdwg.mxu0
  %v356 = vld [vmem:[%s2] sm:$0xf]
  %v357 = vld [vmem:[%s2 + $0x4] sm:$0xf]
  %v358 = vld [vmem:[%s2 + $0x8] sm:$0xf]
  %v359 = vld [vmem:[%s2 + $0xc] sm:$0xf]
  %v360 = vld [vmem:[%s2 + $0x10] sm:$0xf]
  %v361 = vld [vmem:[%s2 + $0x14] sm:$0xf]
  %v362 = vld [vmem:[%s2 + $0x18] sm:$0xf]
  %v363 = vld [vmem:[%s2 + $0x1c] sm:$0xf]
  %v364 = vld [vmem:[%s2 + $0x20] sm:$0xf]
  %v365 = vld [vmem:[%s2 + $0x24] sm:$0xf]
  %v366 = vld [vmem:[%s2 + $0x28] sm:$0xf]
  %v367 = vld [vmem:[%s2 + $0x2c] sm:$0xf]
  %v368 = vld [vmem:[%s2 + $0x30] sm:$0xf]
  %v382 = vunpack.c.l.b16 %v356
  %v383 = vunpack.c.l.b16 %v357
  %v384 = vunpack.c.l.b16 %v358
  %v385 = vunpack.c.l.b16 %v359
  %v386 = vunpack.c.l.b16 %v360
  %v387 = vunpack.c.l.b16 %v361
  %v388 = vunpack.c.l.b16 %v362
  %v389 = vunpack.c.l.b16 %v363
  %v390 = vunpack.c.l.b16 %v364
  %v391 = vunpack.c.l.b16 %v365
  %v392 = vunpack.c.l.b16 %v366
  %v393 = vunpack.c.l.b16 %v367
  %v394 = vunpack.c.l.b16 %v368
  %v395 = vpack.c.b16 %v383, %v382
  %v396 = vpack.c.b16 %v385, %v384
  %v397 = vpack.c.b16 %v387, %v386
  %v398 = vpack.c.b16 %v389, %v388
  %v399 = vpack.c.b16 %v391, %v390
  %v400 = vpack.c.b16 %v393, %v392
  %v401 = vpack.c.b16 %v394, %v394
  %v403 = vsel %vm84, %v395, 0
  %v406 = vsel %vm84, %v396, 0
  %v409 = vsel %vm84, %v397, 0
  %v412 = vsel %vm84, %v398, 0
  %v415 = vsel %vm84, %v399, 0
  %v418 = vsel %vm84, %v400, 0
  %v421 = vsel %vm84, %v401, 0
  %423 = vmatprep.subr.bf16.mxu0 0
  %424 = vmatpush1.bf16.msra.mxu0 %v81
  %425 = vmatprep.subr.bf16.mxu0 0
  %426 = vmatpush1.bf16.msra.mxu0 %v111
  %427 = vmatprep.subr.bf16.mxu0 0
  %428 = vmatpush1.bf16.msra.mxu0 0
  %429 = vmatprep.subr.bf16.mxu0 0
  %430 = vmatpush1.bf16.msra.mxu0 0
  %431 = vmatprep.subr.bf16.mxu0 0
  %432 = vmatpush1.bf16.msra.mxu0 0
  %433 = vmatprep.subr.bf16.mxu0 0
  %434 = vmatpush1.bf16.msra.mxu0 0
  %435 = vmatprep.subr.bf16.mxu0 0
  %436 = vmatpush1.bf16.msra.mxu0 0
  %437 = vmatprep.subr.bf16.mxu0 0
  %438 = vmatpush1.bf16.msra.mxu0 0
  %439 = vmatprep.subr.bf16.mxu0 0
  %440 = vmatpush1.bf16.msra.mxu0 0
  %441 = vmatprep.subr.bf16.mxu0 0
  %442 = vmatpush1.bf16.msra.mxu0 0
  %443 = vmatprep.subr.bf16.mxu0 0
  %444 = vmatpush1.bf16.msra.mxu0 0
  %445 = vmatprep.subr.bf16.mxu0 0
  %446 = vmatpush1.bf16.msra.mxu0 0
  %447 = vmatprep.subr.bf16.mxu0 0
  %448 = vmatpush1.bf16.msra.mxu0 0
  %449 = vmatprep.subr.bf16.mxu0 0
  %450 = vmatpush1.bf16.msra.mxu0 0
  %451 = vmatprep.subr.bf16.mxu0 0
  %452 = vmatpush1.bf16.msra.mxu0 0
  %453 = vmatprep.subr.bf16.mxu0 0
  %454 = vmatpush1.bf16.msra.mxu0 0
  %455 = vmatprep.mubr.bf16.mxu0 0
  %456 = vmatmul.mubr.bf16.gmra.mrb[0].mxu0 %v403
  %v457 = vpop.f32.mrb[0].mxu0
  %v458 = vadd.f32 0.0, %v457
  %v459 = vpop.f32.mrb[0].mxu0
  %v460 = vpop.f32.mrb[0].mxu0
  %v461 = vadd.f32 0.0, %v460
  %v462 = vpop.f32.mrb[0].mxu0
  %463 = vmatprep.mubr.bf16.mxu0 0
  %464 = vmatmul.mubr.bf16.gmra.mrb[0].mxu0 %v406
  %v465 = vpop.f32.mrb[0].mxu0
  %v466 = vadd.f32 0.0, %v465
  %v467 = vpop.f32.mrb[0].mxu0
  %v468 = vpop.f32.mrb[0].mxu0
  %v469 = vadd.f32 0.0, %v468
  %v470 = vpop.f32.mrb[0].mxu0
  %471 = vmatprep.mubr.bf16.mxu0 0
  %472 = vmatmul.mubr.bf16.gmra.mrb[0].mxu0 %v409
  %v473 = vpop.f32.mrb[0].mxu0
  %v474 = vadd.f32 0.0, %v473
  %v475 = vpop.f32.mrb[0].mxu0
  %v476 = vpop.f32.mrb[0].mxu0
  %v477 = vadd.f32 0.0, %v476
  %v478 = vpop.f32.mrb[0].mxu0
  %479 = vmatprep.mubr.bf16.mxu0 0
  %480 = vmatmul.mubr.bf16.gmra.mrb[0].mxu0 %v412
  %v481 = vpop.f32.mrb[0].mxu0
  %v482 = vadd.f32 0.0, %v481
  %v483 = vpop.f32.mrb[0].mxu0
  %v484 = vpop.f32.mrb[0].mxu0
  %v485 = vadd.f32 0.0, %v484
  %v486 = vpop.f32.mrb[0].mxu0
  %487 = vmatprep.mubr.bf16.mxu0 0
  %488 = vmatmul.mubr.bf16.gmra.mrb[0].mxu0 %v415
  %v489 = vpop.f32.mrb[0].mxu0
  %v490 = vadd.f32 0.0, %v489
  %v491 = vpop.f32.mrb[0].mxu0
  %v492 = vpop.f32.mrb[0].mxu0
  %v493 = vadd.f32 0.0, %v492
  %v494 = vpop.f32.mrb[0].mxu0
  %495 = vmatprep.mubr.bf16.mxu0 0
  %496 = vmatmul.mubr.bf16.gmra.mrb[0].mxu0 %v418
  %v497 = vpop.f32.mrb[0].mxu0
  %v498 = vadd.f32 0.0, %v497
  %v499 = vpop.f32.mrb[0].mxu0
  %v500 = vpop.f32.mrb[0].mxu0
  %v501 = vadd.f32 0.0, %v500
  %v502 = vpop.f32.mrb[0].mxu0
  %503 = vmatprep.mubr.bf16.mxu0 0
  %504 = vmatmul.mubr.bf16.gmra.mrb[0].mxu0 %v421
  %v505 = vpop.f32.mrb[0].mxu0
  %v506 = vadd.f32 0.0, %v505
  %v507 = vpop.f32.mrb[0].mxu0
  %v508 = vpop.f32.mrb[0].mxu0
  %v509 = vpop.f32.mrb[0].mxu0
  %510 = vdwg.mxu0
  %v511 = vld [vmem:[%s3] sm:$0xf]
  %v512 = vld [vmem:[%s3 + $0x4] sm:$0xf]
  %v513 = vld [vmem:[%s3 + $0x8] sm:$0xf]
  %v514 = vld [vmem:[%s3 + $0xc] sm:$0xf]
  %v515 = vld [vmem:[%s3 + $0x10] sm:$0xf]
  %v516 = vld [vmem:[%s3 + $0x14] sm:$0xf]
  %v517 = vld [vmem:[%s3 + $0x18] sm:$0xf]
  %v518 = vld [vmem:[%s3 + $0x1c] sm:$0xf]
  %v519 = vld [vmem:[%s3 + $0x20] sm:$0xf]
  %v520 = vld [vmem:[%s3 + $0x24] sm:$0xf]
  %v521 = vld [vmem:[%s3 + $0x28] sm:$0xf]
  %v522 = vld [vmem:[%s3 + $0x2c] sm:$0xf]
  %v523 = vld [vmem:[%s3 + $0x30] sm:$0xf]
  %v537 = vunpack.c.l.b16 %v511
  %v538 = vunpack.c.l.b16 %v512
  %v539 = vunpack.c.l.b16 %v513
  %v540 = vunpack.c.l.b16 %v514
  %v541 = vunpack.c.l.b16 %v515
  %v542 = vunpack.c.l.b16 %v516
  %v543 = vunpack.c.l.b16 %v517
  %v544 = vunpack.c.l.b16 %v518
  %v545 = vunpack.c.l.b16 %v519
  %v546 = vunpack.c.l.b16 %v520
  %v547 = vunpack.c.l.b16 %v521
  %v548 = vunpack.c.l.b16 %v522
  %v549 = vunpack.c.l.b16 %v523
  %v550 = vpack.c.b16 %v538, %v537
  %v551 = vpack.c.b16 %v540, %v539
  %v552 = vpack.c.b16 %v542, %v541
  %v553 = vpack.c.b16 %v544, %v543
  %v554 = vpack.c.b16 %v546, %v545
  %v555 = vpack.c.b16 %v548, %v547
  %v556 = vpack.c.b16 %v549, %v549
  %v558 = vsel %vm84, %v550, 0
  %v561 = vsel %vm84, %v551, 0
  %v564 = vsel %vm84, %v552, 0
  %v567 = vsel %vm84, %v553, 0
  %v570 = vsel %vm84, %v554, 0
  %v573 = vsel %vm84, %v555, 0
  %v576 = vsel %vm84, %v556, 0
  %578 = vmatprep.subr.bf16.mxu0 0
  %579 = vmatpush1.bf16.msra.mxu0 %v81
  %580 = vmatprep.subr.bf16.mxu0 0
  %581 = vmatpush1.bf16.msra.mxu0 %v111
  %582 = vmatprep.subr.bf16.mxu0 0
  %583 = vmatpush1.bf16.msra.mxu0 0
  %584 = vmatprep.subr.bf16.mxu0 0
  %585 = vmatpush1.bf16.msra.mxu0 0
  %586 = vmatprep.subr.bf16.mxu0 0
  %587 = vmatpush1.bf16.msra.mxu0 0
  %588 = vmatprep.subr.bf16.mxu0 0
  %589 = vmatpush1.bf16.msra.mxu0 0
  %590 = vmatprep.subr.bf16.mxu0 0
  %591 = vmatpush1.bf16.msra.mxu0 0
  %592 = vmatprep.subr.bf16.mxu0 0
  %593 = vmatpush1.bf16.msra.mxu0 0
  %594 = vmatprep.subr.bf16.mxu0 0
  %595 = vmatpush1.bf16.msra.mxu0 0
  %596 = vmatprep.subr.bf16.mxu0 0
  %597 = vmatpush1.bf16.msra.mxu0 0
  %598 = vmatprep.subr.bf16.mxu0 0
  %599 = vmatpush1.bf16.msra.mxu0 0
  %600 = vmatprep.subr.bf16.mxu0 0
  %601 = vmatpush1.bf16.msra.mxu0 0
  %602 = vmatprep.subr.bf16.mxu0 0
  %603 = vmatpush1.bf16.msra.mxu0 0
  %604 = vmatprep.subr.bf16.mxu0 0
  %605 = vmatpush1.bf16.msra.mxu0 0
  %606 = vmatprep.subr.bf16.mxu0 0
  %607 = vmatpush1.bf16.msra.mxu0 0
  %608 = vmatprep.subr.bf16.mxu0 0
  %609 = vmatpush1.bf16.msra.mxu0 0
  %610 = vmatprep.mubr.bf16.mxu0 0
  %611 = vmatmul.mubr.bf16.gmra.mrb[0].mxu0 %v558
  %v612 = vpop.f32.mrb[0].mxu0
  %v613 = vadd.f32 0.0, %v612
  %v614 = vpop.f32.mrb[0].mxu0
  %v615 = vpop.f32.mrb[0].mxu0
  %v616 = vadd.f32 0.0, %v615
  %v617 = vpop.f32.mrb[0].mxu0
  %618 = vmatprep.mubr.bf16.mxu0 0
  %619 = vmatmul.mubr.bf16.gmra.mrb[0].mxu0 %v561
  %v620 = vpop.f32.mrb[0].mxu0
  %v621 = vadd.f32 0.0, %v620
  %v622 = vpop.f32.mrb[0].mxu0
  %v623 = vpop.f32.mrb[0].mxu0
  %v624 = vadd.f32 0.0, %v623
  %v625 = vpop.f32.mrb[0].mxu0
  %626 = vmatprep.mubr.bf16.mxu0 0
  %627 = vmatmul.mubr.bf16.gmra.mrb[0].mxu0 %v564
  %v628 = vpop.f32.mrb[0].mxu0
  %v629 = vadd.f32 0.0, %v628
  %v630 = vpop.f32.mrb[0].mxu0
  %v631 = vpop.f32.mrb[0].mxu0
  %v632 = vadd.f32 0.0, %v631
  %v633 = vpop.f32.mrb[0].mxu0
  %634 = vmatprep.mubr.bf16.mxu0 0
  %635 = vmatmul.mubr.bf16.gmra.mrb[0].mxu0 %v567
  %v636 = vpop.f32.mrb[0].mxu0
  %v637 = vadd.f32 0.0, %v636
  %v638 = vpop.f32.mrb[0].mxu0
  %v639 = vpop.f32.mrb[0].mxu0
  %v640 = vadd.f32 0.0, %v639
  %v641 = vpop.f32.mrb[0].mxu0
  %642 = vmatprep.mubr.bf16.mxu0 0
  %643 = vmatmul.mubr.bf16.gmra.mrb[0].mxu0 %v570
  %v644 = vpop.f32.mrb[0].mxu0
  %v645 = vadd.f32 0.0, %v644
  %v646 = vpop.f32.mrb[0].mxu0
  %v647 = vpop.f32.mrb[0].mxu0
  %v648 = vadd.f32 0.0, %v647
  %v649 = vpop.f32.mrb[0].mxu0
  %650 = vmatprep.mubr.bf16.mxu0 0
  %651 = vmatmul.mubr.bf16.gmra.mrb[0].mxu0 %v573
  %v652 = vpop.f32.mrb[0].mxu0
  %v653 = vadd.f32 0.0, %v652
  %v654 = vpop.f32.mrb[0].mxu0
  %v655 = vpop.f32.mrb[0].mxu0
  %v656 = vadd.f32 0.0, %v655
  %v657 = vpop.f32.mrb[0].mxu0
  %658 = vmatprep.mubr.bf16.mxu0 0
  %659 = vmatmul.mubr.bf16.gmra.mrb[0].mxu0 %v576
  %v660 = vpop.f32.mrb[0].mxu0
  %v661 = vadd.f32 0.0, %v660
  %v662 = vpop.f32.mrb[0].mxu0
  %v663 = vpop.f32.mrb[0].mxu0
  %v664 = vpop.f32.mrb[0].mxu0
  %665 = vdwg.mxu0
  %v666 = vmax.f32 %v148, %v303
  %v667 = vmax.f32 %v151, %v306
  %v668 = vmax.f32 %v156, %v311
  %v669 = vmax.f32 %v159, %v314
  %v670 = vmax.f32 %v164, %v319
  %v671 = vmax.f32 %v167, %v322
  %v672 = vmax.f32 %v172, %v327
  %v673 = vmax.f32 %v175, %v330
  %v674 = vmax.f32 %v180, %v335
  %v675 = vmax.f32 %v183, %v338
  %v676 = vmax.f32 %v188, %v343
  %v677 = vmax.f32 %v191, %v346
  %v678 = vmax.f32 %v196, %v351
  %v679 = vmax.f32 %v458, %v613
  %v680 = vmax.f32 %v461, %v616
  %v681 = vmax.f32 %v466, %v621
  %v682 = vmax.f32 %v469, %v624
  %v683 = vmax.f32 %v474, %v629
  %v684 = vmax.f32 %v477, %v632
  %v685 = vmax.f32 %v482, %v637
  %v686 = vmax.f32 %v485, %v640
  %v687 = vmax.f32 %v490, %v645
  %v688 = vmax.f32 %v493, %v648
  %v689 = vmax.f32 %v498, %v653
  %v690 = vmax.f32 %v501, %v656
  %v691 = vmax.f32 %v506, %v661
  %v692 = vmax.f32 %v666, %v679
  %v693 = vmax.f32 %v667, %v680
  %v694 = vmax.f32 %v668, %v681
  %v695 = vmax.f32 %v669, %v682
  %v696 = vmax.f32 %v670, %v683
  %v697 = vmax.f32 %v671, %v684
  %v698 = vmax.f32 %v672, %v685
  %v699 = vmax.f32 %v673, %v686
  %v700 = vmax.f32 %v674, %v687
  %v701 = vmax.f32 %v675, %v688
  %v702 = vmax.f32 %v676, %v689
  %v703 = vmax.f32 %v677, %v690
  %v704 = vmax.f32 %v678, %v691
  %s705 = smul.u32 0, 104
  %v706 = vlaneseq
  %v707 = vshrl.u32 %v706, 7
  %v708 = vadd.s32 %v707, 8
  %v709 = vadd.s32 %v707, 16
  %v710 = vadd.s32 %v707, 24
  %v711 = vadd.s32 %v707, 32
  %v712 = vadd.s32 %v707, 40
  %v713 = vadd.s32 %v707, 48
  %v714 = vadd.s32 %v707, 56
  %v715 = vadd.s32 %v707, 64
  %v716 = vadd.s32 %v707, 72
  %v717 = vadd.s32 %v707, 80
  %v718 = vadd.s32 %v707, 88
  %v719 = vadd.s32 %v707, 96
  %v720 = vstv %s705
  %v721 = vadd.s32 %v720, %v707
  %v722 = vadd.s32 %v720, %v708
  %v723 = vadd.s32 %v720, %v709
  %v724 = vadd.s32 %v720, %v710
  %v725 = vadd.s32 %v720, %v711
  %v726 = vadd.s32 %v720, %v712
  %v727 = vadd.s32 %v720, %v713
  %v728 = vadd.s32 %v720, %v714
  %v729 = vadd.s32 %v720, %v715
  %v730 = vadd.s32 %v720, %v716
  %v731 = vadd.s32 %v720, %v717
  %v732 = vadd.s32 %v720, %v718
  %v733 = vadd.s32 %v720, %v719
  %vm734 = vcmp.lt.s32.totalorder %v721, 98
  %vm735 = vcmp.lt.s32.totalorder %v722, 98
  %vm736 = vcmp.lt.s32.totalorder %v723, 98
  %vm737 = vcmp.lt.s32.totalorder %v724, 98
  %vm738 = vcmp.lt.s32.totalorder %v725, 98
  %vm739 = vcmp.lt.s32.totalorder %v726, 98
  %vm740 = vcmp.lt.s32.totalorder %v727, 98
  %vm741 = vcmp.lt.s32.totalorder %v728, 98
  %vm742 = vcmp.lt.s32.totalorder %v729, 98
  %vm743 = vcmp.lt.s32.totalorder %v730, 98
  %vm744 = vcmp.lt.s32.totalorder %v731, 98
  %vm745 = vcmp.lt.s32.totalorder %v732, 98
  %vm746 = vcmp.lt.s32.totalorder %v733, 98
  %v747 = vsel %vm734, 1, 0
  %v748 = vsel %vm735, 1, 0
  %v749 = vsel %vm736, 1, 0
  %v750 = vsel %vm737, 1, 0
  %v751 = vsel %vm738, 1, 0
  %v752 = vsel %vm739, 1, 0
  %v753 = vsel %vm740, 1, 0
  %v754 = vsel %vm741, 1, 0
  %v755 = vsel %vm742, 1, 0
  %v756 = vsel %vm743, 1, 0
  %v757 = vsel %vm744, 1, 0
  %v758 = vsel %vm745, 1, 0
  %v759 = vsel %vm746, 1, 0
  %vm760 = vcmp.eq.s32.totalorder %v747, 1
  %vm761 = vcmp.eq.s32.totalorder %v748, 1
  %vm762 = vcmp.eq.s32.totalorder %v749, 1
  %vm763 = vcmp.eq.s32.totalorder %v750, 1
  %vm764 = vcmp.eq.s32.totalorder %v751, 1
  %vm765 = vcmp.eq.s32.totalorder %v752, 1
  %vm766 = vcmp.eq.s32.totalorder %v753, 1
  %vm767 = vcmp.eq.s32.totalorder %v754, 1
  %vm768 = vcmp.eq.s32.totalorder %v755, 1
  %vm769 = vcmp.eq.s32.totalorder %v756, 1
  %vm770 = vcmp.eq.s32.totalorder %v757, 1
  %vm771 = vcmp.eq.s32.totalorder %v758, 1
  %vm772 = vcmp.eq.s32.totalorder %v759, 1
  %v773 = vsel %vm760, %v692, 0.0
  %v774 = vsel %vm761, %v693, 0.0
  %v775 = vsel %vm762, %v694, 0.0
  %v776 = vsel %vm763, %v695, 0.0
  %v777 = vsel %vm764, %v696, 0.0
  %v778 = vsel %vm765, %v697, 0.0
  %v779 = vsel %vm766, %v698, 0.0
  %v780 = vsel %vm767, %v699, 0.0
  %v781 = vsel %vm768, %v700, 0.0
  %v782 = vsel %vm769, %v701, 0.0
  %v783 = vsel %vm770, %v702, 0.0
  %v784 = vsel %vm771, %v703, 0.0
  %v785 = vsel %vm772, %v704, 0.0
  %vm786 = vcmask 80896
  %787 = vst.msk [vmem:[%s5] sm:$0xff] %vm786, %v773
  %788 = vst.msk [vmem:[%s5 + $0x8] sm:$0xff] %vm786, %v774
  %789 = vst.msk [vmem:[%s5 + $0x10] sm:$0xff] %vm786, %v775
  %790 = vst.msk [vmem:[%s5 + $0x18] sm:$0xff] %vm786, %v776
  %791 = vst.msk [vmem:[%s5 + $0x20] sm:$0xff] %vm786, %v777
  %792 = vst.msk [vmem:[%s5 + $0x28] sm:$0xff] %vm786, %v778
  %793 = vst.msk [vmem:[%s5 + $0x30] sm:$0xff] %vm786, %v779
  %794 = vst.msk [vmem:[%s5 + $0x38] sm:$0xff] %vm786, %v780
  %795 = vst.msk [vmem:[%s5 + $0x40] sm:$0xff] %vm786, %v781
  %796 = vst.msk [vmem:[%s5 + $0x48] sm:$0xff] %vm786, %v782
  %797 = vst.msk [vmem:[%s5 + $0x50] sm:$0xff] %vm786, %v783
  %798 = vst.msk [vmem:[%s5 + $0x58] sm:$0xff] %vm786, %v784
  %799 = vst.msk [vmem:[%s5 + $0x60] sm:$0xff] %vm786, %v785
  %v800 = vsel %vm786, %v773, 0.0
  %v801 = vsel %vm786, %v774, 0.0
  %v802 = vadd.f32 %v800, %v801
  %v803 = vsel %vm786, %v775, 0.0
  %v804 = vadd.f32 %v802, %v803
  %v805 = vsel %vm786, %v776, 0.0
  %v806 = vadd.f32 %v804, %v805
  %v807 = vsel %vm786, %v777, 0.0
  %v808 = vadd.f32 %v806, %v807
  %v809 = vsel %vm786, %v778, 0.0
  %v810 = vadd.f32 %v808, %v809
  %v811 = vsel %vm786, %v779, 0.0
  %v812 = vadd.f32 %v810, %v811
  %v813 = vsel %vm786, %v780, 0.0
  %v814 = vadd.f32 %v812, %v813
  %v815 = vsel %vm786, %v781, 0.0
  %v816 = vadd.f32 %v814, %v815
  %v817 = vsel %vm786, %v782, 0.0
  %v818 = vadd.f32 %v816, %v817
  %v819 = vsel %vm786, %v783, 0.0
  %v820 = vadd.f32 %v818, %v819
  %v821 = vsel %vm786, %v784, 0.0
  %v822 = vadd.f32 %v820, %v821
  %v823 = vsel %vm786, %v785, 0.0
  %v824 = vadd.f32 %v822, %v823
  %v825 = vrot.slane %v824, 4
  %v826 = vadd.f32 %v824, %v825
  %v827 = vrot.slane %v826, 2
  %v828 = vadd.f32 %v826, %v827
  %v829 = vrot.slane %v828, 1
  %v830 = vadd.f32 %v828, %v829
  %v831 = vmul.f32 %v773, %v773
  %v832 = vmul.f32 %v774, %v774
  %v833 = vmul.f32 %v775, %v775
  %v834 = vmul.f32 %v776, %v776
  %v835 = vmul.f32 %v777, %v777
  %v836 = vmul.f32 %v778, %v778
  %v837 = vmul.f32 %v779, %v779
  %v838 = vmul.f32 %v780, %v780
  %v839 = vmul.f32 %v781, %v781
  %v840 = vmul.f32 %v782, %v782
  %v841 = vmul.f32 %v783, %v783
  %v842 = vmul.f32 %v784, %v784
  %v843 = vmul.f32 %v785, %v785
  %v844 = vsel %vm786, %v831, 0.0
  %v845 = vsel %vm786, %v832, 0.0
  %v846 = vadd.f32 %v844, %v845
  %v847 = vsel %vm786, %v833, 0.0
  %v848 = vadd.f32 %v846, %v847
  %v849 = vsel %vm786, %v834, 0.0
  %v850 = vadd.f32 %v848, %v849
  %v851 = vsel %vm786, %v835, 0.0
  %v852 = vadd.f32 %v850, %v851
  %v853 = vsel %vm786, %v836, 0.0
  %v854 = vadd.f32 %v852, %v853
  %v855 = vsel %vm786, %v837, 0.0
  %v856 = vadd.f32 %v854, %v855
  %v857 = vsel %vm786, %v838, 0.0
  %v858 = vadd.f32 %v856, %v857
  %v859 = vsel %vm786, %v839, 0.0
  %v860 = vadd.f32 %v858, %v859
  %v861 = vsel %vm786, %v840, 0.0
  %v862 = vadd.f32 %v860, %v861
  %v863 = vsel %vm786, %v841, 0.0
  %v864 = vadd.f32 %v862, %v863
  %v865 = vsel %vm786, %v842, 0.0
  %v866 = vadd.f32 %v864, %v865
  %v867 = vsel %vm786, %v843, 0.0
  %v868 = vadd.f32 %v866, %v867
  %v869 = vrot.slane %v868, 4
  %v870 = vadd.f32 %v868, %v869
  %v871 = vrot.slane %v870, 2
  %v872 = vadd.f32 %v870, %v871
  %v873 = vrot.slane %v872, 1
  %v874 = vadd.f32 %v872, %v873
  %vm875 = vcmask 1040384
  %v876 = vsel %vm875, %v830, %v874
  %vm877 = vcmask 74752
  %878 = vst.msk [vmem:[%s6] sm:$0x3] %vm877, %v876
  // Predicated region
  $region22: #{pnet_forward.4} parent=0 // pred_check
    _
  $region23: #{pnet_forward.4} parent=0 // pred_check_branch
    %880 = sbr.rel (0) target = $region25
  $region24: #{pnet_forward.4} parent=0 // pred_region
    _
  $region25: #{pnet_forward.4} parent=0 // pred_fallthru
    _
  // Predicated region
  $region26: #{pnet_forward.4} parent=0 // pred_check
    _
  $region27: #{pnet_forward.4} parent=0 // pred_check_branch
    %882 = sbr.rel (0) target = $region29
  $region28: #{pnet_forward.4} parent=0 // pred_region
    _
  $region29: #{pnet_forward.4} parent=0 // pred_fallthru
    _
  // Predicated region
  $region30: #{pnet_forward.4} parent=0 // pred_check
    _
  $region31: #{pnet_forward.4} parent=0 // pred_check_branch
    %884 = sbr.rel (0) target = $region33
  $region32: #{pnet_forward.4} parent=0 // pred_region
    _
  $region33: #{pnet_forward.4} parent=0 // pred_fallthru
    _
  // Predicated region
  $region34: #{pnet_forward.4} parent=0 // pred_check
    _
  $region35: #{pnet_forward.4} parent=0 // pred_check_branch
    %886 = sbr.rel (0) target = $region37
  $region36: #{pnet_forward.4} parent=0 // pred_region
    _
  $region37: #{pnet_forward.4} parent=0 // pred_fallthru
    _

// kernel: pnet_forward.5
$region0: #{pnet_forward.5}
  #allocation0 [shape = 'u32[]', space=smem, size = 0x4, offset = 0x4, fixed_abs, tag = 'smem constant byte address 0x4 - core index']
  #allocation1 [shape = 'u32[144,128]{1,0:T(1,128)}', space=vmem, size = 0x12000, scoped, tag = 'internal scratch']
  #allocation2 [shape = 'f32[1,1]{1,0:T(1,128)S(1)}', space=vmem, size = 0x200, scoped, tag = 'scoped memory for pnet_forward.5']
  %s0 = inlined_call_operand.vmem [shape: bf16[56,90], index: 0, kind: input, shape index: {}]
  %s1 = inlined_call_operand.vmem [shape: f32[1,90], index: 1, kind: input, shape index: {}]
  %s2 = inlined_call_operand.vmem [shape: f32[1,90], index: 2, kind: input, shape index: {}]
  %s3 = inlined_call_operand.<no memory space> [shape: f32[1,1], index: 3, kind: input, shape index: {}]
  %s4 = inlined_call_operand.vmem [shape: bf16[90,16], index: 4, kind: input, shape index: {}]
  %s5 = inlined_call_operand.vmem [shape: f32[56,16], index: 5, kind: output, shape index: {0}]
  %s6 = inlined_call_operand.vmem [shape: f32[1,2,16], index: 6, kind: output, shape index: {1}]
  %7 = xla_tuple %s5, %s6
  %s8 = sld [smem:[#allocation0]]
  $region38: #{pnet_forward.5} parent=0
    _
  %s10 = ssub.s32 1, %s8
  %s11 = scalar_select 0, %s10, %s8
  %v12 = vstv %s3
  %13 = vst [vmem:[#allocation2] sm:$0x1] %v12
  // Predicated region
  $region2: #{pnet_forward.5} parent=0 // pred_check
    _
  $region3: #{pnet_forward.5} parent=0 // pred_check_branch
    %15 = sbr.rel (0) target = $region5
  $region4: #{pnet_forward.5} parent=0 // pred_region
    _
  $region5: #{pnet_forward.5} parent=0 // pred_fallthru
    _
  // Predicated region
  $region6: #{pnet_forward.5} parent=0 // pred_check
    _
  $region7: #{pnet_forward.5} parent=0 // pred_check_branch
    %17 = sbr.rel (0) target = $region9
  $region8: #{pnet_forward.5} parent=0 // pred_region
    _
  $region9: #{pnet_forward.5} parent=0 // pred_fallthru
    _
  // Predicated region
  $region10: #{pnet_forward.5} parent=0 // pred_check
    _
  $region11: #{pnet_forward.5} parent=0 // pred_check_branch
    %19 = sbr.rel (0) target = $region13
  $region12: #{pnet_forward.5} parent=0 // pred_region
    _
  $region13: #{pnet_forward.5} parent=0 // pred_fallthru
    _
  // Predicated region
  $region14: #{pnet_forward.5} parent=0 // pred_check
    _
  $region15: #{pnet_forward.5} parent=0 // pred_check_branch
    %21 = sbr.rel (0) target = $region17
  $region16: #{pnet_forward.5} parent=0 // pred_region
    _
  $region17: #{pnet_forward.5} parent=0 // pred_fallthru
    _
  // Predicated region
  $region18: #{pnet_forward.5} parent=0 // pred_check
    _
  $region19: #{pnet_forward.5} parent=0 // pred_check_branch
    %23 = sbr.rel (0) target = $region21
  $region20: #{pnet_forward.5} parent=0 // pred_region
    _
  $region21: #{pnet_forward.5} parent=0 // pred_fallthru
    _
  %v25 = vld [vmem:[%s0] sm:$0xf]
  %v26 = vld [vmem:[%s0 + $0x4] sm:$0xf]
  %v27 = vld [vmem:[%s0 + $0x8] sm:$0xf]
  %v28 = vld [vmem:[%s0 + $0xc] sm:$0xf]
  %v29 = vld [vmem:[%s0 + $0x10] sm:$0xf]
  %v30 = vld [vmem:[%s0 + $0x14] sm:$0xf]
  %v31 = vld [vmem:[%s0 + $0x18] sm:$0xf]
  %v32 = vunpack.c.l.bf16 %v25
  %v33 = vunpack.c.l.bf16 %v26
  %v34 = vunpack.c.l.bf16 %v27
  %v35 = vunpack.c.l.bf16 %v28
  %v36 = vunpack.c.l.bf16 %v29
  %v37 = vunpack.c.l.bf16 %v30
  %v38 = vunpack.c.l.bf16 %v31
  %v39 = vld [vmem:[%s1] sm:$0x1]
  %v41 = vlaneseq
  %v42 = vshrl.u32 %v41, 7
  %v43 = vsub.s32 0, %v42
  %v44 = vrot.slane %v39, %v43
  %v46 = vmul.f32 %v32, %v44
  %v47 = vmul.f32 %v33, %v44
  %v48 = vmul.f32 %v34, %v44
  %v49 = vmul.f32 %v35, %v44
  %v50 = vmul.f32 %v36, %v44
  %v51 = vmul.f32 %v37, %v44
  %v52 = vmul.f32 %v38, %v44
  %v53 = vld [vmem:[%s2] sm:$0x1]
  %v55 = vlaneseq
  %v56 = vshrl.u32 %v55, 7
  %v57 = vsub.s32 0, %v56
  %v58 = vrot.slane %v53, %v57
  %v60 = vadd.f32 %v46, %v58
  %v61 = vadd.f32 %v47, %v58
  %v62 = vadd.f32 %v48, %v58
  %v63 = vadd.f32 %v49, %v58
  %v64 = vadd.f32 %v50, %v58
  %v65 = vadd.f32 %v51, %v58
  %v66 = vadd.f32 %v52, %v58
  %vm67 = vcmp.ge.f32.partialorder %v60, 0.0
  %vm68 = vcmp.ge.f32.partialorder %v61, 0.0
  %vm69 = vcmp.ge.f32.partialorder %v62, 0.0
  %vm70 = vcmp.ge.f32.partialorder %v63, 0.0
  %vm71 = vcmp.ge.f32.partialorder %v64, 0.0
  %vm72 = vcmp.ge.f32.partialorder %v65, 0.0
  %vm73 = vcmp.ge.f32.partialorder %v66, 0.0
  %v74 = vld [vmem:[#allocation2] sm:$0x1]
  %s75 = vtos %v74
  %v76 = vstv %s75
  %v77 = vmul.f32 %v76, %v60
  %v78 = vmul.f32 %v76, %v61
  %v79 = vmul.f32 %v76, %v62
  %v80 = vmul.f32 %v76, %v63
  %v81 = vmul.f32 %v76, %v64
  %v82 = vmul.f32 %v76, %v65
  %v83 = vmul.f32 %v76, %v66
  %v84 = vsel %vm67, %v60, %v77
  %v85 = vsel %vm68, %v61, %v78
  %v86 = vsel %vm69, %v62, %v79
  %v87 = vsel %vm70, %v63, %v80
  %v88 = vsel %vm71, %v64, %v81
  %v89 = vsel %vm72, %v65, %v82
  %v90 = vsel %vm73, %v66, %v83
  %v91 = vpack.c.bf16 %v85, %v84
  %v92 = vpack.c.bf16 %v87, %v86
  %v93 = vpack.c.bf16 %v89, %v88
  %v94 = vpack.c.bf16 %v90, %v90
  %v95 = vld [vmem:[%s4] sm:$0xf]
  %v96 = vld [vmem:[%s4 + $0x4] sm:$0xf]
  %v97 = vld [vmem:[%s4 + $0x8] sm:$0xf]
  %v98 = vld [vmem:[%s4 + $0xc] sm:$0xf]
  %v99 = vld [vmem:[%s4 + $0x10] sm:$0xf]
  %v100 = vld [vmem:[%s4 + $0x14] sm:$0xf]
  %v101 = vld [vmem:[%s4 + $0x18] sm:$0xf]
  %v102 = vld [vmem:[%s4 + $0x1c] sm:$0xf]
  %v103 = vld [vmem:[%s4 + $0x20] sm:$0xf]
  %v104 = vld [vmem:[%s4 + $0x24] sm:$0xf]
  %v105 = vld [vmem:[%s4 + $0x28] sm:$0xf]
  %v106 = vld [vmem:[%s4 + $0x2c] sm:$0x1]
  %v119 = vunpack.c.l.b16 %v95
  %v120 = vunpack.c.l.b16 %v96
  %v121 = vunpack.c.l.b16 %v97
  %v122 = vunpack.c.l.b16 %v98
  %v123 = vunpack.c.l.b16 %v99
  %v124 = vunpack.c.l.b16 %v100
  %v125 = vunpack.c.l.b16 %v101
  %v126 = vunpack.c.l.b16 %v102
  %v127 = vunpack.c.l.b16 %v103
  %v128 = vunpack.c.l.b16 %v104
  %v129 = vunpack.c.l.b16 %v105
  %v130 = vunpack.c.l.b16 %v106
  %v131 = vpack.c.b16 %v120, %v119
  %v132 = vpack.c.b16 %v122, %v121
  %v133 = vpack.c.b16 %v124, %v123
  %v134 = vpack.c.b16 %v126, %v125
  %v135 = vpack.c.b16 %v128, %v127
  %v136 = vpack.c.b16 %v130, %v129
  %vm142 = vcmask 736256
  %v144 = vsel %vm142, %v91, 0
  %v147 = vsel %vm142, %v92, 0
  %v150 = vsel %vm142, %v93, 0
  %v153 = vsel %vm142, %v94, 0
  %vm155 = vcmask 1044480
  %v157 = vsel %vm155, %v136, 0
  %159 = vmatprep.subr.bf16.mxu0 0
  %160 = vmatpush1.bf16.msra.mxu0 %v131
  %161 = vmatprep.subr.bf16.mxu0 0
  %162 = vmatpush1.bf16.msra.mxu0 %v132
  %163 = vmatprep.subr.bf16.mxu0 0
  %164 = vmatpush1.bf16.msra.mxu0 %v133
  %165 = vmatprep.subr.bf16.mxu0 0
  %166 = vmatpush1.bf16.msra.mxu0 %v134
  %167 = vmatprep.subr.bf16.mxu0 0
  %168 = vmatpush1.bf16.msra.mxu0 %v135
  %169 = vmatprep.subr.bf16.mxu0 0
  %170 = vmatpush1.bf16.msra.mxu0 %v157
  %171 = vmatprep.subr.bf16.mxu0 0
  %172 = vmatpush1.bf16.msra.mxu0 0
  %173 = vmatprep.subr.bf16.mxu0 0
  %174 = vmatpush1.bf16.msra.mxu0 0
  %175 = vmatprep.subr.bf16.mxu0 0
  %176 = vmatpush1.bf16.msra.mxu0 0
  %177 = vmatprep.subr.bf16.mxu0 0
  %178 = vmatpush1.bf16.msra.mxu0 0
  %179 = vmatprep.subr.bf16.mxu0 0
  %180 = vmatpush1.bf16.msra.mxu0 0
  %181 = vmatprep.subr.bf16.mxu0 0
  %182 = vmatpush1.bf16.msra.mxu0 0
  %183 = vmatprep.subr.bf16.mxu0 0
  %184 = vmatpush1.bf16.msra.mxu0 0
  %185 = vmatprep.subr.bf16.mxu0 0
  %186 = vmatpush1.bf16.msra.mxu0 0
  %187 = vmatprep.subr.bf16.mxu0 0
  %188 = vmatpush1.bf16.msra.mxu0 0
  %189 = vmatprep.subr.bf16.mxu0 0
  %190 = vmatpush1.bf16.msra.mxu0 0
  %191 = vmatprep.mubr.bf16.mxu0 0
  %192 = vmatmul.mubr.bf16.gmra.mrb[0].mxu0 %v144
  %v193 = vpop.f32.mrb[0].mxu0
  %v194 = vadd.f32 0.0, %v193
  %v195 = vpop.f32.mrb[0].mxu0
  %v196 = vpop.f32.mrb[0].mxu0
  %v197 = vadd.f32 0.0, %v196
  %v198 = vpop.f32.mrb[0].mxu0
  %199 = vmatprep.mubr.bf16.mxu0 0
  %200 = vmatmul.mubr.bf16.gmra.mrb[0].mxu0 %v147
  %v201 = vpop.f32.mrb[0].mxu0
  %v202 = vadd.f32 0.0, %v201
  %v203 = vpop.f32.mrb[0].mxu0
  %v204 = vpop.f32.mrb[0].mxu0
  %v205 = vadd.f32 0.0, %v204
  %v206 = vpop.f32.mrb[0].mxu0
  %207 = vmatprep.mubr.bf16.mxu0 0
  %208 = vmatmul.mubr.bf16.gmra.mrb[0].mxu0 %v150
  %v209 = vpop.f32.mrb[0].mxu0
  %v210 = vadd.f32 0.0, %v209
  %v211 = vpop.f32.mrb[0].mxu0
  %v212 = vpop.f32.mrb[0].mxu0
  %v213 = vadd.f32 0.0, %v212
  %v214 = vpop.f32.mrb[0].mxu0
  %215 = vmatprep.mubr.bf16.mxu0 0
  %216 = vmatmul.mubr.bf16.gmra.mrb[0].mxu0 %v153
  %v217 = vpop.f32.mrb[0].mxu0
  %v218 = vadd.f32 0.0, %v217
  %v219 = vpop.f32.mrb[0].mxu0
  %v220 = vpop.f32.mrb[0].mxu0
  %v221 = vpop.f32.mrb[0].mxu0
  %222 = vdwg.mxu0
  %s223 = smul.u32 0, 56
  %v224 = vlaneseq
  %v225 = vshrl.u32 %v224, 7
  %v226 = vadd.s32 %v225, 8
  %v227 = vadd.s32 %v225, 16
  %v228 = vadd.s32 %v225, 24
  %v229 = vadd.s32 %v225, 32
  %v230 = vadd.s32 %v225, 40
  %v231 = vadd.s32 %v225, 48
  %v232 = vstv %s223
  %v233 = vadd.s32 %v232, %v225
  %v234 = vadd.s32 %v232, %v226
  %v235 = vadd.s32 %v232, %v227
  %v236 = vadd.s32 %v232, %v228
  %v237 = vadd.s32 %v232, %v229
  %v238 = vadd.s32 %v232, %v230
  %v239 = vadd.s32 %v232, %v231
  %vm240 = vcmp.lt.s32.totalorder %v233, 50
  %vm241 = vcmp.lt.s32.totalorder %v234, 50
  %vm242 = vcmp.lt.s32.totalorder %v235, 50
  %vm243 = vcmp.lt.s32.totalorder %v236, 50
  %vm244 = vcmp.lt.s32.totalorder %v237, 50
  %vm245 = vcmp.lt.s32.totalorder %v238, 50
  %vm246 = vcmp.lt.s32.totalorder %v239, 50
  %v247 = vsel %vm240, 1, 0
  %v248 = vsel %vm241, 1, 0
  %v249 = vsel %vm242, 1, 0
  %v250 = vsel %vm243, 1, 0
  %v251 = vsel %vm244, 1, 0
  %v252 = vsel %vm245, 1, 0
  %v253 = vsel %vm246, 1, 0
  %vm254 = vcmp.eq.s32.totalorder %v247, 1
  %vm255 = vcmp.eq.s32.totalorder %v248, 1
  %vm256 = vcmp.eq.s32.totalorder %v249, 1
  %vm257 = vcmp.eq.s32.totalorder %v250, 1
  %vm258 = vcmp.eq.s32.totalorder %v251, 1
  %vm259 = vcmp.eq.s32.totalorder %v252, 1
  %vm260 = vcmp.eq.s32.totalorder %v253, 1
  %v261 = vsel %vm254, %v194, 0.0
  %v262 = vsel %vm255, %v197, 0.0
  %v263 = vsel %vm256, %v202, 0.0
  %v264 = vsel %vm257, %v205, 0.0
  %v265 = vsel %vm258, %v210, 0.0
  %v266 = vsel %vm259, %v213, 0.0
  %v267 = vsel %vm260, %v218, 0.0
  %vm268 = vcmask 130048
  %269 = vst.msk [vmem:[%s5] sm:$0xff] %vm268, %v261
  %270 = vst.msk [vmem:[%s5 + $0x8] sm:$0xff] %vm268, %v262
  %271 = vst.msk [vmem:[%s5 + $0x10] sm:$0xff] %vm268, %v263
  %272 = vst.msk [vmem:[%s5 + $0x18] sm:$0xff] %vm268, %v264
  %273 = vst.msk [vmem:[%s5 + $0x20] sm:$0xff] %vm268, %v265
  %274 = vst.msk [vmem:[%s5 + $0x28] sm:$0xff] %vm268, %v266
  %275 = vst.msk [vmem:[%s5 + $0x30] sm:$0xff] %vm268, %v267
  %v276 = vsel %vm268, %v261, 0.0
  %v277 = vsel %vm268, %v262, 0.0
  %v278 = vadd.f32 %v276, %v277
  %v279 = vsel %vm268, %v263, 0.0
  %v280 = vadd.f32 %v278, %v279
  %v281 = vsel %vm268, %v264, 0.0
  %v282 = vadd.f32 %v280, %v281
  %v283 = vsel %vm268, %v265, 0.0
  %v284 = vadd.f32 %v282, %v283
  %v285 = vsel %vm268, %v266, 0.0
  %v286 = vadd.f32 %v284, %v285
  %v287 = vsel %vm268, %v267, 0.0
  %v288 = vadd.f32 %v286, %v287
  %v289 = vrot.slane %v288, 4
  %v290 = vadd.f32 %v288, %v289
  %v291 = vrot.slane %v290, 2
  %v292 = vadd.f32 %v290, %v291
  %v293 = vrot.slane %v292, 1
  %v294 = vadd.f32 %v292, %v293
  %v295 = vmul.f32 %v261, %v261
  %v296 = vmul.f32 %v262, %v262
  %v297 = vmul.f32 %v263, %v263
  %v298 = vmul.f32 %v264, %v264
  %v299 = vmul.f32 %v265, %v265
  %v300 = vmul.f32 %v266, %v266
  %v301 = vmul.f32 %v267, %v267
  %v302 = vsel %vm268, %v295, 0.0
  %v303 = vsel %vm268, %v296, 0.0
  %v304 = vadd.f32 %v302, %v303
  %v305 = vsel %vm268, %v297, 0.0
  %v306 = vadd.f32 %v304, %v305
  %v307 = vsel %vm268, %v298, 0.0
  %v308 = vadd.f32 %v306, %v307
  %v309 = vsel %vm268, %v299, 0.0
  %v310 = vadd.f32 %v308, %v309
  %v311 = vsel %vm268, %v300, 0.0
  %v312 = vadd.f32 %v310, %v311
  %v313 = vsel %vm268, %v301, 0.0
  %v314 = vadd.f32 %v312, %v313
  %v315 = vrot.slane %v314, 4
  %v316 = vadd.f32 %v314, %v315
  %v317 = vrot.slane %v316, 2
  %v318 = vadd.f32 %v316, %v317
  %v319 = vrot.slane %v318, 1
  %v320 = vadd.f32 %v318, %v319
  %vm321 = vcmask 1040384
  %v322 = vsel %vm321, %v294, %v320
  %vm323 = vcmask 123904
  %324 = vst.msk [vmem:[%s6] sm:$0x3] %vm323, %v322
  // Predicated region
  $region22: #{pnet_forward.5} parent=0 // pred_check
    _
  $region23: #{pnet_forward.5} parent=0 // pred_check_branch
    %326 = sbr.rel (0) target = $region25
  $region24: #{pnet_forward.5} parent=0 // pred_region
    _
  $region25: #{pnet_forward.5} parent=0 // pred_fallthru
    _
  // Predicated region
  $region26: #{pnet_forward.5} parent=0 // pred_check
    _
  $region27: #{pnet_forward.5} parent=0 // pred_check_branch
    %328 = sbr.rel (0) target = $region29
  $region28: #{pnet_forward.5} parent=0 // pred_region
    _
  $region29: #{pnet_forward.5} parent=0 // pred_fallthru
    _
  // Predicated region
  $region30: #{pnet_forward.5} parent=0 // pred_check
    _
  $region31: #{pnet_forward.5} parent=0 // pred_check_branch
    %330 = sbr.rel (0) target = $region33
  $region32: #{pnet_forward.5} parent=0 // pred_region
    _
  $region33: #{pnet_forward.5} parent=0 // pred_fallthru
    _
  // Predicated region
  $region34: #{pnet_forward.5} parent=0 // pred_check
    _
  $region35: #{pnet_forward.5} parent=0 // pred_check_branch
    %332 = sbr.rel (0) target = $region37
  $region36: #{pnet_forward.5} parent=0 // pred_region
    _
  $region37: #{pnet_forward.5} parent=0 // pred_fallthru
    _

// kernel: pnet_forward.6
$region0: #{pnet_forward.6}
  #allocation0 [shape = 'u32[]', space=smem, size = 0x4, offset = 0x4, fixed_abs, tag = 'smem constant byte address 0x4 - core index']
  #allocation1 [shape = 'u32[144,128]{1,0:T(1,128)}', space=vmem, size = 0x12000, scoped, tag = 'internal scratch']
  #allocation2 [shape = 'f32[1,1]{1,0:T(1,128)S(1)}', space=vmem, size = 0x200, scoped, tag = 'scoped memory for pnet_forward.6']
  %s0 = inlined_call_operand.vmem [shape: bf16[24,144], index: 0, kind: input, shape index: {}]
  %s1 = inlined_call_operand.vmem [shape: f32[1,144], index: 1, kind: input, shape index: {}]
  %s2 = inlined_call_operand.vmem [shape: f32[1,144], index: 2, kind: input, shape index: {}]
  %s3 = inlined_call_operand.<no memory space> [shape: f32[1,1], index: 3, kind: input, shape index: {}]
  %s4 = inlined_call_operand.vmem [shape: bf16[144,32], index: 4, kind: input, shape index: {}]
  %s5 = inlined_call_operand.vmem [shape: f32[24,32], index: 5, kind: output, shape index: {0}]
  %s6 = inlined_call_operand.vmem [shape: f32[1,2,32], index: 6, kind: output, shape index: {1}]
  %7 = xla_tuple %s5, %s6
  %s8 = sld [smem:[#allocation0]]
  $region38: #{pnet_forward.6} parent=0
    _
  %s10 = ssub.s32 1, %s8
  %s11 = scalar_select 0, %s10, %s8
  %v12 = vstv %s3
  %13 = vst [vmem:[#allocation2] sm:$0x1] %v12
  // Predicated region
  $region2: #{pnet_forward.6} parent=0 // pred_check
    _
  $region3: #{pnet_forward.6} parent=0 // pred_check_branch
    %15 = sbr.rel (0) target = $region5
  $region4: #{pnet_forward.6} parent=0 // pred_region
    _
  $region5: #{pnet_forward.6} parent=0 // pred_fallthru
    _
  // Predicated region
  $region6: #{pnet_forward.6} parent=0 // pred_check
    _
  $region7: #{pnet_forward.6} parent=0 // pred_check_branch
    %17 = sbr.rel (0) target = $region9
  $region8: #{pnet_forward.6} parent=0 // pred_region
    _
  $region9: #{pnet_forward.6} parent=0 // pred_fallthru
    _
  // Predicated region
  $region10: #{pnet_forward.6} parent=0 // pred_check
    _
  $region11: #{pnet_forward.6} parent=0 // pred_check_branch
    %19 = sbr.rel (0) target = $region13
  $region12: #{pnet_forward.6} parent=0 // pred_region
    _
  $region13: #{pnet_forward.6} parent=0 // pred_fallthru
    _
  // Predicated region
  $region14: #{pnet_forward.6} parent=0 // pred_check
    _
  $region15: #{pnet_forward.6} parent=0 // pred_check_branch
    %21 = sbr.rel (0) target = $region17
  $region16: #{pnet_forward.6} parent=0 // pred_region
    _
  $region17: #{pnet_forward.6} parent=0 // pred_fallthru
    _
  // Predicated region
  $region18: #{pnet_forward.6} parent=0 // pred_check
    _
  $region19: #{pnet_forward.6} parent=0 // pred_check_branch
    %23 = sbr.rel (0) target = $region21
  $region20: #{pnet_forward.6} parent=0 // pred_region
    _
  $region21: #{pnet_forward.6} parent=0 // pred_fallthru
    _
  %v25 = vld [vmem:[%s0] sm:$0xff]
  %v26 = vld [vmem:[%s0 + $0x8] sm:$0xff]
  %v27 = vld [vmem:[%s0 + $0x10] sm:$0xff]
  %v28 = vunpack.c.l.bf16 %v25
  %v29 = vunpack.c.h.bf16 %v25
  %v30 = vunpack.c.l.bf16 %v26
  %v31 = vunpack.c.h.bf16 %v26
  %v32 = vunpack.c.l.bf16 %v27
  %v33 = vunpack.c.h.bf16 %v27
  %v34 = vld [vmem:[%s1] sm:$0x3]
  %v36 = vlaneseq
  %v37 = vshrl.u32 %v36, 7
  %v38 = vsub.s32 0, %v37
  %v39 = vrot.slane %v34, %v38
  %v40 = vlaneseq
  %v41 = vshrl.u32 %v40, 7
  %v42 = vsub.s32 1, %v41
  %v43 = vrot.slane %v34, %v42
  %v46 = vmul.f32 %v28, %v39
  %v47 = vmul.f32 %v29, %v43
  %v48 = vmul.f32 %v30, %v39
  %v49 = vmul.f32 %v31, %v43
  %v50 = vmul.f32 %v32, %v39
  %v51 = vmul.f32 %v33, %v43
  %v52 = vld [vmem:[%s2] sm:$0x3]
  %v54 = vlaneseq
  %v55 = vshrl.u32 %v54, 7
  %v56 = vsub.s32 0, %v55
  %v57 = vrot.slane %v52, %v56
  %v58 = vlaneseq
  %v59 = vshrl.u32 %v58, 7
  %v60 = vsub.s32 1, %v59
  %v61 = vrot.slane %v52, %v60
  %v64 = vadd.f32 %v46, %v57
  %v65 = vadd.f32 %v47, %v61
  %v66 = vadd.f32 %v48, %v57
  %v67 = vadd.f32 %v49, %v61
  %v68 = vadd.f32 %v50, %v57
  %v69 = vadd.f32 %v51, %v61
  %vm70 = vcmp.ge.f32.partialorder %v64, 0.0
  %vm71 = vcmp.ge.f32.partialorder %v65, 0.0
  %vm72 = vcmp.ge.f32.partialorder %v66, 0.0
  %vm73 = vcmp.ge.f32.partialorder %v67, 0.0
  %vm74 = vcmp.ge.f32.partialorder %v68, 0.0
  %vm75 = vcmp.ge.f32.partialorder %v69, 0.0
  %v76 = vld [vmem:[#allocation2] sm:$0x1]
  %s77 = vtos %v76
  %v78 = vstv %s77
  %v79 = vmul.f32 %v78, %v64
  %v80 = vmul.f32 %v78, %v65
  %v81 = vmul.f32 %v78, %v66
  %v82 = vmul.f32 %v78, %v67
  %v83 = vmul.f32 %v78, %v68
  %v84 = vmul.f32 %v78, %v69
  %v85 = vsel %vm70, %v64, %v79
  %v86 = vsel %vm71, %v65, %v80
  %v87 = vsel %vm72, %v66, %v81
  %v88 = vsel %vm73, %v67, %v82
  %v89 = vsel %vm74, %v68, %v83
  %v90 = vsel %vm75, %v69, %v84
  %v91 = vpack.c.bf16 %v87, %v85
  %v92 = vpack.c.bf16 %v88, %v86
  %v93 = vpack.c.bf16 %v89, %v89
  %v94 = vpack.c.bf16 %v90, %v90
  %v95 = vld [vmem:[%s4] sm:$0xf]
  %v96 = vld [vmem:[%s4 + $0x4] sm:$0xf]
  %v97 = vld [vmem:[%s4 + $0x8] sm:$0xf]
  %v98 = vld [vmem:[%s4 + $0xc] sm:$0xf]
  %v99 = vld [vmem:[%s4 + $0x10] sm:$0xf]
  %v100 = vld [vmem:[%s4 + $0x14] sm:$0xf]
  %v101 = vld [vmem:[%s4 + $0x18] sm:$0xf]
  %v102 = vld [vmem:[%s4 + $0x1c] sm:$0xf]
  %v103 = vld [vmem:[%s4 + $0x20] sm:$0xf]
  %v104 = vld [vmem:[%s4 + $0x24] sm:$0xf]
  %v105 = vld [vmem:[%s4 + $0x28] sm:$0xf]
  %v106 = vld [vmem:[%s4 + $0x2c] sm:$0xf]
  %v107 = vld [vmem:[%s4 + $0x30] sm:$0xf]
  %v108 = vld [vmem:[%s4 + $0x34] sm:$0xf]
  %v109 = vld [vmem:[%s4 + $0x38] sm:$0xf]
  %v110 = vld [vmem:[%s4 + $0x3c] sm:$0xf]
  %v111 = vld [vmem:[%s4 + $0x40] sm:$0xf]
  %v112 = vld [vmem:[%s4 + $0x44] sm:$0xf]
  %v131 = vunpack.c.l.b16 %v95
  %v132 = vunpack.c.l.b16 %v96
  %v133 = vunpack.c.l.b16 %v97
  %v134 = vunpack.c.l.b16 %v98
  %v135 = vunpack.c.l.b16 %v99
  %v136 = vunpack.c.l.b16 %v100
  %v137 = vunpack.c.l.b16 %v101
  %v138 = vunpack.c.l.b16 %v102
  %v139 = vunpack.c.l.b16 %v103
  %v140 = vunpack.c.l.b16 %v104
  %v141 = vunpack.c.l.b16 %v105
  %v142 = vunpack.c.l.b16 %v106
  %v143 = vunpack.c.l.b16 %v107
  %v144 = vunpack.c.l.b16 %v108
  %v145 = vunpack.c.l.b16 %v109
  %v146 = vunpack.c.l.b16 %v110
  %v147 = vunpack.c.l.b16 %v111
  %v148 = vunpack.c.l.b16 %v112
  %v149 = vpack.c.b16 %v132, %v131
  %v150 = vpack.c.b16 %v134, %v133
  %v151 = vpack.c.b16 %v136, %v135
  %v152 = vpack.c.b16 %v138, %v137
  %v153 = vpack.c.b16 %v140, %v139
  %v154 = vpack.c.b16 %v142, %v141
  %v155 = vpack.c.b16 %v144, %v143
  %v156 = vpack.c.b16 %v146, %v145
  %v157 = vpack.c.b16 %v148, %v147
  %vm167 = vcmask 130048
  %v169 = vsel %vm167, %v92, 0
  %v172 = vsel %vm167, %v94, 0
  %174 = vmatprep.subr.bf16.mxu0 0
  %175 = vmatpush1.bf16.msra.mxu0 %v149
  %176 = vmatprep.subr.bf16.mxu0 0
  %177 = vmatpush1.bf16.msra.mxu0 %v150
  %178 = vmatprep.subr.bf16.mxu0 0
  %179 = vmatpush1.bf16.msra.mxu0 %v151
  %180 = vmatprep.subr.bf16.mxu0 0
  %181 = vmatpush1.bf16.msra.mxu0 %v152
  %182 = vmatprep.subr.bf16.mxu0 0
  %183 = vmatpush1.bf16.msra.mxu0 %v153
  %184 = vmatprep.subr.bf16.mxu0 0
  %185 = vmatpush1.bf16.msra.mxu0 %v154
  %186 = vmatprep.subr.bf16.mxu0 0
  %187 = vmatpush1.bf16.msra.mxu0 %v155
  %188 = vmatprep.subr.bf16.mxu0 0
  %189 = vmatpush1.bf16.msra.mxu0 %v156
  %190 = vmatprep.subr.bf16.mxu0 0
  %191 = vmatpush1.bf16.msra.mxu0 %v157
  %192 = vmatprep.subr.bf16.mxu0 0
  %193 = vmatpush1.bf16.msra.mxu0 0
  %194 = vmatprep.subr.bf16.mxu0 0
  %195 = vmatpush1.bf16.msra.mxu0 0
  %196 = vmatprep.subr.bf16.mxu0 0
  %197 = vmatpush1.bf16.msra.mxu0 0
  %198 = vmatprep.subr.bf16.mxu0 0
  %199 = vmatpush1.bf16.msra.mxu0 0
  %200 = vmatprep.subr.bf16.mxu0 0
  %201 = vmatpush1.bf16.msra.mxu0 0
  %202 = vmatprep.subr.bf16.mxu0 0
  %203 = vmatpush1.bf16.msra.mxu0 0
  %204 = vmatprep.subr.bf16.mxu0 0
  %205 = vmatpush1.bf16.msra.mxu0 0
  %206 = vmatprep.mubr.bf16.mxu0 %v169
  %207 = vmatmul.mubr.bf16.gmra.mrb[0].mxu0 %v91
  %v208 = vpop.f32.mrb[0].mxu0
  %v209 = vadd.f32 0.0, %v208
  %v210 = vpop.f32.mrb[0].mxu0
  %v211 = vpop.f32.mrb[0].mxu0
  %v212 = vadd.f32 0.0, %v211
  %v213 = vpop.f32.mrb[0].mxu0
  %214 = vmatprep.mubr.bf16.mxu0 %v172
  %215 = vmatmul.mubr.bf16.gmra.mrb[0].mxu0 %v93
  %v216 = vpop.f32.mrb[0].mxu0
  %v217 = vadd.f32 0.0, %v216
  %v218 = vpop.f32.mrb[0].mxu0
  %v219 = vpop.f32.mrb[0].mxu0
  %v220 = vpop.f32.mrb[0].mxu0
  %221 = vdwg.mxu0
  %s222 = smul.u32 0, 24
  %v223 = vlaneseq
  %v224 = vshrl.u32 %v223, 7
  %v225 = vadd.s32 %v224, 8
  %v226 = vadd.s32 %v224, 16
  %v227 = vstv %s222
  %v228 = vadd.s32 %v227, %v224
  %v229 = vadd.s32 %v227, %v225
  %v230 = vadd.s32 %v227, %v226
  %vm231 = vcmp.lt.s32.totalorder %v228, 18
  %vm232 = vcmp.lt.s32.totalorder %v229, 18
  %vm233 = vcmp.lt.s32.totalorder %v230, 18
  %v234 = vsel %vm231, 1, 0
  %v235 = vsel %vm232, 1, 0
  %v236 = vsel %vm233, 1, 0
  %vm237 = vcmp.eq.s32.totalorder %v234, 1
  %vm238 = vcmp.eq.s32.totalorder %v235, 1
  %vm239 = vcmp.eq.s32.totalorder %v236, 1
  %v240 = vsel %vm237, %v209, 0.0
  %v241 = vsel %vm238, %v212, 0.0
  %v242 = vsel %vm239, %v217, 0.0
  %vm243 = vcmask 261120
  %244 = vst.msk [vmem:[%s5] sm:$0xff] %vm243, %v240
  %245 = vst.msk [vmem:[%s5 + $0x8] sm:$0xff] %vm243, %v241
  %246 = vst.msk [vmem:[%s5 + $0x10] sm:$0xff] %vm243, %v242
  %v247 = vsel %vm243, %v240, 0.0
  %v248 = vsel %vm243, %v241, 0.0
  %v249 = vadd.f32 %v247, %v248
  %v250 = vsel %vm243, %v242, 0.0
  %v251 = vadd.f32 %v249, %v250
  %v252 = vrot.slane %v251, 4
  %v253 = vadd.f32 %v251, %v252
  %v254 = vrot.slane %v253, 2
  %v255 = vadd.f32 %v253, %v254
  %v256 = vrot.slane %v255, 1
  %v257 = vadd.f32 %v255, %v256
  %v258 = vmul.f32 %v240, %v240
  %v259 = vmul.f32 %v241, %v241
  %v260 = vmul.f32 %v242, %v242
  %v261 = vsel %vm243, %v258, 0.0
  %v262 = vsel %vm243, %v259, 0.0
  %v263 = vadd.f32 %v261, %v262
  %v264 = vsel %vm243, %v260, 0.0
  %v265 = vadd.f32 %v263, %v264
  %v266 = vrot.slane %v265, 4
  %v267 = vadd.f32 %v265, %v266
  %v268 = vrot.slane %v267, 2
  %v269 = vadd.f32 %v267, %v268
  %v270 = vrot.slane %v269, 1
  %v271 = vadd.f32 %v269, %v270
  %vm272 = vcmask 1040384
  %v273 = vsel %vm272, %v257, %v271
  %vm274 = vcmask 254976
  %275 = vst.msk [vmem:[%s6] sm:$0x3] %vm274, %v273
  // Predicated region
  $region22: #{pnet_forward.6} parent=0 // pred_check
    _
  $region23: #{pnet_forward.6} parent=0 // pred_check_branch
    %277 = sbr.rel (0) target = $region25
  $region24: #{pnet_forward.6} parent=0 // pred_region
    _
  $region25: #{pnet_forward.6} parent=0 // pred_fallthru
    _
  // Predicated region
  $region26: #{pnet_forward.6} parent=0 // pred_check
    _
  $region27: #{pnet_forward.6} parent=0 // pred_check_branch
    %279 = sbr.rel (0) target = $region29
  $region28: #{pnet_forward.6} parent=0 // pred_region
    _
  $region29: #{pnet_forward.6} parent=0 // pred_fallthru
    _
  // Predicated region
  $region30: #{pnet_forward.6} parent=0 // pred_check
    _
  $region31: #{pnet_forward.6} parent=0 // pred_check_branch
    %281 = sbr.rel (0) target = $region33
  $region32: #{pnet_forward.6} parent=0 // pred_region
    _
  $region33: #{pnet_forward.6} parent=0 // pred_fallthru
    _
  // Predicated region
  $region34: #{pnet_forward.6} parent=0 // pred_check
    _
  $region35: #{pnet_forward.6} parent=0 // pred_check_branch
    %283 = sbr.rel (0) target = $region37
  $region36: #{pnet_forward.6} parent=0 // pred_region
    _
  $region37: #{pnet_forward.6} parent=0 // pred_fallthru
    _

// kernel: pnet_forward.7
$region0: #{pnet_forward.7}
  #allocation0 [shape = 'u32[]', space=smem, size = 0x4, offset = 0x4, fixed_abs, tag = 'smem constant byte address 0x4 - core index']
  #allocation1 [shape = 'u32[144,128]{1,0:T(1,128)}', space=vmem, size = 0x12000, scoped, tag = 'internal scratch']
  #allocation2 [shape = 'f32[1,1]{1,0:T(1,128)S(1)}', space=vmem, size = 0x200, scoped, tag = 'scoped memory for pnet_forward.7']
  %s0 = inlined_call_operand.vmem [shape: f32[24,32], index: 0, kind: input, shape index: {}]
  %s1 = inlined_call_operand.vmem [shape: f32[1,32], index: 1, kind: input, shape index: {}]
  %s2 = inlined_call_operand.vmem [shape: f32[1,32], index: 2, kind: input, shape index: {}]
  %s3 = inlined_call_operand.<no memory space> [shape: f32[1,1], index: 3, kind: input, shape index: {}]
  %s4 = inlined_call_operand.vmem [shape: f32[32,15], index: 4, kind: input, shape index: {}]
  %s5 = inlined_call_operand.vmem [shape: f32[1,15], index: 5, kind: input, shape index: {}]
  %s6 = inlined_call_operand.vmem [shape: f32[24,15], index: 6, kind: output, shape index: {}]
  %s7 = sld [smem:[#allocation0]]
  $region34: #{pnet_forward.7} parent=0
    _
  %s9 = ssub.s32 1, %s7
  %s10 = scalar_select 0, %s9, %s7
  %v11 = vstv %s3
  %12 = vst [vmem:[#allocation2] sm:$0x1] %v11
  // Predicated region
  $region2: #{pnet_forward.7} parent=0 // pred_check
    _
  $region3: #{pnet_forward.7} parent=0 // pred_check_branch
    %14 = sbr.rel (0) target = $region5
  $region4: #{pnet_forward.7} parent=0 // pred_region
    _
  $region5: #{pnet_forward.7} parent=0 // pred_fallthru
    _
  // Predicated region
  $region6: #{pnet_forward.7} parent=0 // pred_check
    _
  $region7: #{pnet_forward.7} parent=0 // pred_check_branch
    %16 = sbr.rel (0) target = $region9
  $region8: #{pnet_forward.7} parent=0 // pred_region
    _
  $region9: #{pnet_forward.7} parent=0 // pred_fallthru
    _
  // Predicated region
  $region10: #{pnet_forward.7} parent=0 // pred_check
    _
  $region11: #{pnet_forward.7} parent=0 // pred_check_branch
    %18 = sbr.rel (0) target = $region13
  $region12: #{pnet_forward.7} parent=0 // pred_region
    _
  $region13: #{pnet_forward.7} parent=0 // pred_fallthru
    _
  // Predicated region
  $region14: #{pnet_forward.7} parent=0 // pred_check
    _
  $region15: #{pnet_forward.7} parent=0 // pred_check_branch
    %20 = sbr.rel (0) target = $region17
  $region16: #{pnet_forward.7} parent=0 // pred_region
    _
  $region17: #{pnet_forward.7} parent=0 // pred_fallthru
    _
  // Predicated region
  $region18: #{pnet_forward.7} parent=0 // pred_check
    _
  $region19: #{pnet_forward.7} parent=0 // pred_check_branch
    %22 = sbr.rel (0) target = $region21
  $region20: #{pnet_forward.7} parent=0 // pred_region
    _
  $region21: #{pnet_forward.7} parent=0 // pred_fallthru
    _
  // Predicated region
  $region22: #{pnet_forward.7} parent=0 // pred_check
    _
  $region23: #{pnet_forward.7} parent=0 // pred_check_branch
    %24 = sbr.rel (0) target = $region25
  $region24: #{pnet_forward.7} parent=0 // pred_region
    _
  $region25: #{pnet_forward.7} parent=0 // pred_fallthru
    _
  %v25 = vld [vmem:[%s0] sm:$0xff]
  %v26 = vld [vmem:[%s0 + $0x8] sm:$0xff]
  %v27 = vld [vmem:[%s0 + $0x10] sm:$0xff]
  %v28 = vld [vmem:[%s1] sm:$0x1]
  %v30 = vlaneseq
  %v31 = vshrl.u32 %v30, 7
  %v32 = vsub.s32 0, %v31
  %v33 = vrot.slane %v28, %v32
  %v35 = vmul.f32 %v25, %v33
  %v36 = vmul.f32 %v26, %v33
  %v37 = vmul.f32 %v27, %v33
  %v38 = vld [vmem:[%s2] sm:$0x1]
  %v40 = vlaneseq
  %v41 = vshrl.u32 %v40, 7
  %v42 = vsub.s32 0, %v41
  %v43 = vrot.slane %v38, %v42
  %v45 = vadd.f32 %v35, %v43
  %v46 = vadd.f32 %v36, %v43
  %v47 = vadd.f32 %v37, %v43
  %vm48 = vcmp.ge.f32.partialorder %v45, 0.0
  %vm49 = vcmp.ge.f32.partialorder %v46, 0.0
  %vm50 = vcmp.ge.f32.partialorder %v47, 0.0
  %v51 = vld [vmem:[#allocation2] sm:$0x1]
  %s52 = vtos %v51
  %v53 = vstv %s52
  %v54 = vmul.f32 %v53, %v45
  %v55 = vmul.f32 %v53, %v46
  %v56 = vmul.f32 %v53, %v47
  %v57 = vsel %vm48, %v45, %v54
  %v58 = vsel %vm49, %v46, %v55
  %v59 = vsel %vm50, %v47, %v56
  %v60 = vld [vmem:[%s4] sm:$0xff]
  %v61 = vld [vmem:[%s4 + $0x8] sm:$0xff]
  %v62 = vld [vmem:[%s4 + $0x10] sm:$0xff]
  %v63 = vld [vmem:[%s4 + $0x18] sm:$0xff]
  %v64 = vld [vmem:[%s5] sm:$0x1]
  %v66 = vlaneseq
  %v67 = vshrl.u32 %v66, 7
  %v68 = vsub.s32 0, %v67
  %v69 = vrot.slane %v64, %v68
  %vm71 = vcmask 261120
  %v73 = vsel %vm71, %v57, 0
  %v76 = vsel %vm71, %v58, 0
  %v79 = vsel %vm71, %v59, 0
  %81 = vmatprep.subr.mxu0 0.0
  %82 = vmatpush1.msra.mxu0 %v60
  %83 = vmatprep.subr.mxu0 0.0
  %84 = vmatpush1.msra.mxu0 %v61
  %85 = vmatprep.subr.mxu0 0.0
  %86 = vmatpush1.msra.mxu0 %v62
  %87 = vmatprep.subr.mxu0 0.0
  %88 = vmatpush1.msra.mxu0 %v63
  %89 = vmatprep.subr.mxu0 0.0
  %90 = vmatpush1.msra.mxu0 0.0
  %91 = vmatprep.subr.mxu0 0.0
  %92 = vmatpush1.msra.mxu0 0.0
  %93 = vmatprep.subr.mxu0 0.0
  %94 = vmatpush1.msra.mxu0 0.0
  %95 = vmatprep.subr.mxu0 0.0
  %96 = vmatpush1.msra.mxu0 0.0
  %97 = vmatprep.subr.mxu0 0.0
  %98 = vmatpush1.msra.mxu0 0.0
  %99 = vmatprep.subr.mxu0 0.0
  %100 = vmatpush1.msra.mxu0 0.0
  %101 = vmatprep.subr.mxu0 0.0
  %102 = vmatpush1.msra.mxu0 0.0
  %103 = vmatprep.subr.mxu0 0.0
  %104 = vmatpush1.msra.mxu0 0.0
  %105 = vmatprep.subr.mxu0 0.0
  %106 = vmatpush1.msra.mxu0 0.0
  %107 = vmatprep.subr.mxu0 0.0
  %108 = vmatpush1.msra.mxu0 0.0
  %109 = vmatprep.subr.mxu0 0.0
  %110 = vmatpush1.msra.mxu0 0.0
  %111 = vmatprep.subr.mxu0 0.0
  %112 = vmatpush1.msra.mxu0 0.0
  %113 = vmatprep.subr.mxu0 0.0
  %114 = vmatpush1.msra.mxu0 0.0
  %115 = vmatprep.subr.mxu0 0.0
  %116 = vmatpush1.msra.mxu0 0.0
  %117 = vmatprep.subr.mxu0 0.0
  %118 = vmatpush1.msra.mxu0 0.0
  %119 = vmatprep.subr.mxu0 0.0
  %120 = vmatpush1.msra.mxu0 0.0
  %121 = vmatprep.subr.mxu0 0.0
  %122 = vmatpush1.msra.mxu0 0.0
  %123 = vmatprep.subr.mxu0 0.0
  %124 = vmatpush1.msra.mxu0 0.0
  %125 = vmatprep.subr.mxu0 0.0
  %126 = vmatpush1.msra.mxu0 0.0
  %127 = vmatprep.subr.mxu0 0.0
  %128 = vmatpush1.msra.mxu0 0.0
  %129 = vmatprep.subr.mxu0 0.0
  %130 = vmatpush1.msra.mxu0 0.0
  %131 = vmatprep.subr.mxu0 0.0
  %132 = vmatpush1.msra.mxu0 0.0
  %133 = vmatprep.subr.mxu0 0.0
  %134 = vmatpush1.msra.mxu0 0.0
  %135 = vmatprep.subr.mxu0 0.0
  %136 = vmatpush1.msra.mxu0 0.0
  %137 = vmatprep.subr.mxu0 0.0
  %138 = vmatpush1.msra.mxu0 0.0
  %139 = vmatprep.subr.mxu0 0.0
  %140 = vmatpush1.msra.mxu0 0.0
  %141 = vmatprep.subr.mxu0 0.0
  %142 = vmatpush1.msra.mxu0 0.0
  %143 = vmatprep.subr.mxu0 0.0
  %144 = vmatpush1.msra.mxu0 0.0
  %145 = vmatprep.mubr.f32.mxu0 0.0
  %146 = vmatmul.mubr.f32.gmra.mrb[0].mxu0 %v73
  %v147 = vpop.f32.mrb[0].mxu0
  %v148 = vadd.f32 %v69, %v147
  %v149 = vpop.f32.mrb[0].mxu0
  %150 = vmatprep.mubr.f32.mxu0 0.0
  %151 = vmatmul.mubr.f32.gmra.mrb[0].mxu0 %v76
  %v152 = vpop.f32.mrb[0].mxu0
  %v153 = vadd.f32 %v69, %v152
  %v154 = vpop.f32.mrb[0].mxu0
  %155 = vmatprep.mubr.f32.mxu0 0.0
  %156 = vmatmul.mubr.f32.gmra.mrb[0].mxu0 %v79
  %v157 = vpop.f32.mrb[0].mxu0
  %v158 = vadd.f32 %v69, %v157
  %v159 = vpop.f32.mrb[0].mxu0
  %160 = vdwg.mxu0
  %v161 = vlaneseq
  %v162 = vand.u32 %v161, 127
  %vm163 = vcmp.eq.s32.totalorder %v162, 0
  %v164 = vsub.f32 0.0, %v148
  %v165 = vsub.f32 0.0, %v153
  %v166 = vsub.f32 0.0, %v158
  %v167 = vmul.f32 %v164, 1.442695
  %v168 = vpow.pop %v167
  %v169 = vmul.f32 %v165, 1.442695
  %v170 = vpow.pop %v169
  %v171 = vmul.f32 %v166, 1.442695
  %v172 = vpow.pop %v171
  %v173 = vadd.f32 %v168, 1.0
  %v174 = vadd.f32 %v170, 1.0
  %v175 = vadd.f32 %v172, 1.0
  %v176 = vrcp.pop %v173
  %v177 = vmul.f32 1.0, %v176
  %v178 = vrcp.pop %v174
  %v179 = vmul.f32 1.0, %v178
  %v180 = vrcp.pop %v175
  %v181 = vmul.f32 1.0, %v180
  %v182 = vsel %vm163, %v177, %v148
  %v183 = vsel %vm163, %v179, %v153
  %v184 = vsel %vm163, %v181, %v158
  %vm185 = vcmask 121856
  %186 = vst.msk [vmem:[%s6] sm:$0xff] %vm185, %v182
  %187 = vst.msk [vmem:[%s6 + $0x8] sm:$0xff] %vm185, %v183
  %188 = vst.msk [vmem:[%s6 + $0x10] sm:$0xff] %vm185, %v184
  // Predicated region
  $region26: #{pnet_forward.7} parent=0 // pred_check
    _
  $region27: #{pnet_forward.7} parent=0 // pred_check_branch
    %190 = sbr.rel (0) target = $region29
  $region28: #{pnet_forward.7} parent=0 // pred_region
    _
  $region29: #{pnet_forward.7} parent=0 // pred_fallthru
    _
  // Predicated region
  $region30: #{pnet_forward.7} parent=0 // pred_check
    _
  $region31: #{pnet_forward.7} parent=0 // pred_check_branch
    %192 = sbr.rel (0) target = $region33
  $region32: #{pnet_forward.7} parent=0 // pred_region
    _
  $region33: #{pnet_forward.7} parent=0 // pred_fallthru
    _

</llo_original>
